<compile_context>
chip_gen: v7x
topology: tpu7x:2x2x1
jax: 0.10.0
libtpu: 0.0.40
codegen_flags: <defaults>
</compile_context>

<pallas_src>
import math
import functools

import jax
import jax.numpy as jnp
from jax.experimental import pallas as pl
from jax.experimental.pallas import tpu as pltpu


# ----------------------------------------------------------------------------
# Kernel 1: fused per-head Q/K/V projection.
#   grid = (batch, seq-tiles, heads); each step does three (ts, D) x (D, dh)
#   MXU matmuls (f32 accumulation) and stores bf16 results in (B, H, S, dh).
# ----------------------------------------------------------------------------
def qkv_projection_kernel(xq_ref, xk_ref, xv_ref,
                          wq_ref, bq_ref, wk_ref, bk_ref, wv_ref, bv_ref,
                          qo_ref, ko_ref, vo_ref, *, compute_dtype):
    def proj(x_ref, w_ref, b_ref, o_ref):
        x = x_ref[0].astype(compute_dtype)                       # (ts, D)
        y = jnp.dot(x, w_ref[0], preferred_element_type=jnp.float32)  # (ts, dh)
        o_ref[0, 0] = (y + b_ref[0]).astype(o_ref.dtype)

    proj(xq_ref, wq_ref, bq_ref, qo_ref)   # Q (scale pre-folded into wq/bq)
    proj(xk_ref, wk_ref, bk_ref, ko_ref)
    proj(xv_ref, wv_ref, bv_ref, vo_ref)


# ----------------------------------------------------------------------------
# Kernel 2: per-(batch, head, q-tile) flash attention over kv tiles.
#   grid = (batch, heads, q-tiles, kv-tiles); online softmax with f32 running
#   stats in VMEM scratch; key-padding bias synthesized in-kernel from an
#   O(B*S) validity vector.
# ----------------------------------------------------------------------------
def flash_attention_kernel(q_ref, k_ref, v_ref, kmask_ref, ctx_ref,
                           m_scr, l_scr, acc_scr, *, compute_dtype):
    ki = pl.program_id(3)

    @pl.when(ki == 0)
    def _init():
        m_scr[...] = jnp.full(m_scr.shape, -jnp.inf, dtype=jnp.float32)
        l_scr[...] = jnp.zeros(l_scr.shape, dtype=jnp.float32)
        acc_scr[...] = jnp.zeros(acc_scr.shape, dtype=jnp.float32)

    q = q_ref[0, 0]                          # (bq, dh)  bf16, already scaled
    k = k_ref[0, 0]                          # (bk, dh)  bf16
    v = v_ref[0, 0]                          # (bk, dh)  bf16

    # scores: contract over dh without an explicit k transpose -> (bq, bk), f32
    s = jax.lax.dot_general(q, k, (((1,), (1,)), ((), ())),
                            preferred_element_type=jnp.float32)
    # additive key-padding bias from the (1, bk) validity row (O(S) HBM traffic)
    s = s + jnp.where(kmask_ref[0] == 0.0, -1e9, 0.0)

    # online softmax update (f32 math, lane-replicated running stats)
    m_prev = m_scr[...]                                          # (bq, 128)
    m_new = jnp.maximum(m_prev, jnp.max(s, axis=-1, keepdims=True))
    alpha = jnp.exp(m_prev - m_new)                              # (bq, 128)
    p = jnp.exp(s - m_new[:, :1])                                # (bq, bk) f32
    # TODO(synk): training-mode attention dropout on `p` is not implemented
    # (reference nn.Dropout is a no-op at inference time).
    l_scr[...] = alpha * l_scr[...] + jnp.sum(p, axis=-1, keepdims=True)

    pv = jnp.dot(p.astype(compute_dtype), v,
                 preferred_element_type=jnp.float32)             # (bq, dh)
    if acc_scr.shape[-1] == alpha.shape[-1]:                     # dh == 128
        acc_scr[...] = alpha * acc_scr[...] + pv
    else:
        acc_scr[...] = alpha[:, :1] * acc_scr[...] + pv
    m_scr[...] = m_new

    @pl.when(ki == pl.num_programs(3) - 1)
    def _finalize():
        inv_l = pl.reciprocal(l_scr[...], approx=True)           # EUP slot
        if acc_scr.shape[-1] == inv_l.shape[-1]:
            ctx = acc_scr[...] * inv_l
        else:
            ctx = acc_scr[...] * inv_l[:, :1]
        ctx_ref[0, 0] = ctx.astype(ctx_ref.dtype)


# ----------------------------------------------------------------------------
# Kernel 3: head-concat folded into the output projection.
#   grid = (batch, q-tiles); per-head (bq, dh) x (dh, D) MXU matmuls
#   accumulated in f32 (no (H, bq, D) materialization + VPU reduce).
# ----------------------------------------------------------------------------
def output_projection_kernel(ctx_ref, wo_ref, bo_ref, out_ref, *, head_count):
    acc = jnp.dot(ctx_ref[0, 0], wo_ref[0], preferred_element_type=jnp.float32)
    for h in range(1, head_count):
        acc = acc + jnp.dot(ctx_ref[0, h], wo_ref[h],
                            preferred_element_type=jnp.float32)
    out_ref[0] = (acc + bo_ref[...]).astype(out_ref.dtype)


# ----------------------------------------------------------------------------
# Wrapper
# ----------------------------------------------------------------------------
def multi_head_attention(q, k, v, key_mask, params, *, head_count,
                         block_q=None, block_k=None, block_s=None,
                         compute_dtype=jnp.bfloat16,
                         vmem_limit_bytes=48 * 1024 * 1024):
    """Forward pass of MultiHeadAttentionSegment (eval mode).

    key_mask: (B, S) with 1 = attend, 0 = masked (key-padding semantics).
    TODO(synk): arbitrary (B,1,S,S) masks (e.g. causal) would need either an
    in-kernel iota-based causal bias or a streamed dense-bias variant; the
    O(B*S) key mask is the form recommended by the perf review.
    """
    B, S, D = q.shape
    H = head_count
    assert D % H == 0, "model dimensions not divisible by head count"
    dh = D // H

    if block_q is None:
        block_q = min(S, 256)
    if block_k is None:
        block_k = min(S, 512)
    if block_s is None:
        block_s = min(S, 512)
    assert S % block_q == 0 and S % block_k == 0 and S % block_s == 0
    assert block_q % 8 == 0 or block_q == S
    assert block_s % 8 == 0 or block_s == S
    assert block_k % 128 == 0 or block_k == S, \
        "key-mask lane tile must be a multiple of 128 (or the full sequence)"

    wq, bq, wk, bk, wv, bv, wo, bo = params
    scale = 1.0 / math.sqrt(dh)

    # One-time host-side parameter transforms: per-head split, 1/sqrt(dh)
    # folded into the Q projection, MXU-operand dtype cast for the weights.
    wq3 = (wq * scale).reshape(D, H, dh).transpose(1, 0, 2).astype(compute_dtype)
    wk3 = wk.reshape(D, H, dh).transpose(1, 0, 2).astype(compute_dtype)
    wv3 = wv.reshape(D, H, dh).transpose(1, 0, 2).astype(compute_dtype)
    wo3 = wo.reshape(H, dh, D).astype(compute_dtype)           # rows h*dh:(h+1)*dh
    bq3 = (bq * scale).reshape(H, 1, dh).astype(jnp.float32)
    bk3 = bk.reshape(H, 1, dh).astype(jnp.float32)
    bv3 = bv.reshape(H, 1, dh).astype(jnp.float32)
    bo2 = bo.reshape(1, D).astype(jnp.float32)

    if key_mask is None:
        km = jnp.ones((B, 1, S), dtype=jnp.float32)
    else:
        km = key_mask.reshape(B, 1, S).astype(jnp.float32)

    cparams = pltpu.CompilerParams(vmem_limit_bytes=vmem_limit_bytes)
    # NOTE: resident weight specs could also use pipeline_mode=pl.Buffered(1)
    # to single-buffer them on v7x's 64 MiB VMEM; left default here since the
    # weight tiles are tiny at this D.

    # ---------------- 1) fused Q/K/V projections (hoisted, done once) --------
    n_s = S // block_s
    x_spec = pl.BlockSpec((1, block_s, D), lambda b, si, h: (b, si, 0))
    w_spec = pl.BlockSpec((1, D, dh), lambda b, si, h: (h, 0, 0))
    b_spec = pl.BlockSpec((1, 1, dh), lambda b, si, h: (h, 0, 0))
    p_spec = pl.BlockSpec((1, 1, block_s, dh), lambda b, si, h: (b, h, si, 0))

    q_p, k_p, v_p = pl.pallas_call(
        functools.partial(qkv_projection_kernel, compute_dtype=compute_dtype),
        out_shape=(jax.ShapeDtypeStruct((B, H, S, dh), compute_dtype),
                   jax.ShapeDtypeStruct((B, H, S, dh), compute_dtype),
                   jax.ShapeDtypeStruct((B, H, S, dh), compute_dtype)),
        grid_spec=pltpu.PrefetchScalarGridSpec(
            num_scalar_prefetch=0,
            grid=(B, n_s, H),
            in_specs=[x_spec, x_spec, x_spec,
                      w_spec, b_spec, w_spec, b_spec, w_spec, b_spec],
            out_specs=[p_spec, p_spec, p_spec]),
        compiler_params=pltpu.CompilerParams(
            dimension_semantics=("parallel", "parallel", "parallel"),
            vmem_limit_bytes=vmem_limit_bytes),
    )(q, k, v, wq3, bq3, wk3, bk3, wv3, bv3)

    # ---------------- 2) flash attention over projected tensors --------------
    n_q = S // block_q
    n_k = S // block_k
    ctx = pl.pallas_call(
        functools.partial(flash_attention_kernel, compute_dtype=compute_dtype),
        out_shape=jax.ShapeDtypeStruct((B, H, S, dh), compute_dtype),
        grid_spec=pltpu.PrefetchScalarGridSpec(
            num_scalar_prefetch=0,
            grid=(B, H, n_q, n_k),
            in_specs=[
                pl.BlockSpec((1, 1, block_q, dh), lambda b, h, qi, ki: (b, h, qi, 0)),
                pl.BlockSpec((1, 1, block_k, dh), lambda b, h, qi, ki: (b, h, ki, 0)),
                pl.BlockSpec((1, 1, block_k, dh), lambda b, h, qi, ki: (b, h, ki, 0)),
                pl.BlockSpec((1, 1, block_k), lambda b, h, qi, ki: (b, 0, ki)),
            ],
            out_specs=pl.BlockSpec((1, 1, block_q, dh),
                                   lambda b, h, qi, ki: (b, h, qi, 0)),
            scratch_shapes=[
                pltpu.VMEM((block_q, 128), jnp.float32),   # running max (lane-dense)
                pltpu.VMEM((block_q, 128), jnp.float32),   # running sum (lane-dense)
                pltpu.VMEM((block_q, dh), jnp.float32),    # output accumulator
            ]),
        compiler_params=pltpu.CompilerParams(
            dimension_semantics=("parallel", "parallel", "parallel", "arbitrary"),
            vmem_limit_bytes=vmem_limit_bytes),
    )(q_p, k_p, v_p, km)

    # ---------------- 3) head-concat folded into the W_o projection ----------
    out = pl.pallas_call(
        functools.partial(output_projection_kernel, head_count=H),
        out_shape=jax.ShapeDtypeStruct((B, S, D), q.dtype),
        grid_spec=pltpu.PrefetchScalarGridSpec(
            num_scalar_prefetch=0,
            grid=(B, n_q),
            in_specs=[
                pl.BlockSpec((1, H, block_q, dh), lambda b, qi: (b, 0, qi, 0)),
                pl.BlockSpec((H, dh, D), lambda b, qi: (0, 0, 0)),
                pl.BlockSpec((1, D), lambda b, qi: (0, 0)),
            ],
            out_specs=pl.BlockSpec((1, block_q, D), lambda b, qi: (b, qi, 0))),
        compiler_params=pltpu.CompilerParams(
            dimension_semantics=("parallel", "parallel"),
            vmem_limit_bytes=vmem_limit_bytes),
    )(ctx, wo3, bo2)

    return out


# ----------------------------------------------------------------------------
# Pure-JAX reference mirroring the PyTorch module (eval mode), f32.
# ----------------------------------------------------------------------------
def reference_mha(q, k, v, mask, params, *, head_count):
    B, S, D = q.shape
    dh = D // head_count
    wq, bq, wk, bk, wv, bv, wo, bo = params

    def split_heads(x):
        return x.reshape(B, S, head_count, dh).transpose(0, 2, 1, 3)

    with jax.default_matmul_precision("highest"):
        Q = split_heads(q @ wq + bq)
        K = split_heads(k @ wk + bk)
        V = split_heads(v @ wv + bv)
        scores = jnp.einsum("bhqd,bhkd->bhqk", Q, K) / math.sqrt(dh)
        if mask is not None:
            scores = jnp.where(mask == 0, -1e9, scores)
        probs = jax.nn.softmax(scores, axis=-1)
        out = jnp.einsum("bhqk,bhkd->bhqd", probs, V)
        out = out.transpose(0, 2, 1, 3).reshape(B, S, D)
        return out @ wo + bo


if __name__ == "__main__":
    # dh = 128 -> full-width MXU contraction per head; S = 256 with 128-wide
    # tiles exercises the multi-q-tile and multi-kv-tile online-softmax paths.
    B, S, D, H = 2, 256, 256, 2

    key = jax.random.PRNGKey(0)
    keys = jax.random.split(key, 12)

    q = jax.random.normal(keys[0], (B, S, D), dtype=jnp.float32)
    k = jax.random.normal(keys[1], (B, S, D), dtype=jnp.float32)
    v = jax.random.normal(keys[2], (B, S, D), dtype=jnp.float32)

    # Key-padding mask: last 130 key positions of batch 1 are masked out
    # (spans a partially- and a fully-masked kv tile).
    key_mask = jnp.ones((B, S), dtype=jnp.float32)
    key_mask = key_mask.at[1, S - 130:].set(0.0)
    # Dense (B, 1, S, S) mask with identical semantics for the reference.
    mask = jnp.broadcast_to(key_mask[:, None, None, :], (B, 1, S, S))

    scale = 1.0 / math.sqrt(D)
    params = (
        jax.random.uniform(keys[3], (D, D), minval=-scale, maxval=scale),   # wq
        jax.random.uniform(keys[4], (D,), minval=-scale, maxval=scale),     # bq
        jax.random.uniform(keys[5], (D, D), minval=-scale, maxval=scale),   # wk
        jax.random.uniform(keys[6], (D,), minval=-scale, maxval=scale),     # bk
        jax.random.uniform(keys[7], (D, D), minval=-scale, maxval=scale),   # wv
        jax.random.uniform(keys[8], (D,), minval=-scale, maxval=scale),     # bv
        jax.random.uniform(keys[9], (D, D), minval=-scale, maxval=scale),   # wo
        jax.random.uniform(keys[10], (D,), minval=-scale, maxval=scale),    # bo
    )

    out = multi_head_attention(q, k, v, key_mask, params, head_count=H,
                               block_q=128, block_k=128, block_s=128)
    out = jax.block_until_ready(out)

    ref = reference_mha(q, k, v, mask, params, head_count=H)
    assert out.shape == (B, S, D)
    # Tolerance covers bf16 MXU operands + bf16 intermediates + approx reciprocal.
    max_err = float(jnp.max(jnp.abs(out - ref)))
    assert jnp.allclose(out, ref, atol=3e-2, rtol=3e-2), \
        f"mismatch vs reference (max abs err {max_err})"

    print("KERNEL_OK")
</pallas_src>

<mosaic_0001>
module attributes {stable_mosaic.version = 11 : i64} {
  func.func @qkv_projection_kernel(%arg0: i32, %arg1: i32, %arg2: i32, %arg3: memref<1x128x256xf32, #tpu.memory_space<vmem>>, %arg4: memref<1x128x256xf32, #tpu.memory_space<vmem>>, %arg5: memref<1x128x256xf32, #tpu.memory_space<vmem>>, %arg6: memref<1x256x128xbf16, #tpu.memory_space<vmem>>, %arg7: memref<1x1x128xf32, #tpu.memory_space<vmem>>, %arg8: memref<1x256x128xbf16, #tpu.memory_space<vmem>>, %arg9: memref<1x1x128xf32, #tpu.memory_space<vmem>>, %arg10: memref<1x256x128xbf16, #tpu.memory_space<vmem>>, %arg11: memref<1x1x128xf32, #tpu.memory_space<vmem>>, %arg12: memref<1x1x128x128xbf16, #tpu.memory_space<vmem>>, %arg13: memref<1x1x128x128xbf16, #tpu.memory_space<vmem>>, %arg14: memref<1x1x128x128xbf16, #tpu.memory_space<vmem>>) attributes {dimension_semantics = [#tpu.dimension_semantics<parallel>, #tpu.dimension_semantics<parallel>, #tpu.dimension_semantics<parallel>], iteration_bounds = array<i64: 2, 2, 2>, scalar_prefetch = 0 : i64, scratch_operands = 0 : i64, tpu.core_type = #tpu.core_type<tc>, window_params = [{transform_indices = @transform_0, window_bounds = array<i64: 1, 128, 256>}, {transform_indices = @transform_1, window_bounds = array<i64: 1, 128, 256>}, {transform_indices = @transform_2, window_bounds = array<i64: 1, 128, 256>}, {transform_indices = @transform_3, window_bounds = array<i64: 1, 256, 128>}, {transform_indices = @transform_4, window_bounds = array<i64: 1, 1, 128>}, {transform_indices = @transform_5, window_bounds = array<i64: 1, 256, 128>}, {transform_indices = @transform_6, window_bounds = array<i64: 1, 1, 128>}, {transform_indices = @transform_7, window_bounds = array<i64: 1, 256, 128>}, {transform_indices = @transform_8, window_bounds = array<i64: 1, 1, 128>}, {transform_indices = @transform_9, window_bounds = array<i64: 1, 1, 128, 128>}, {transform_indices = @transform_10, window_bounds = array<i64: 1, 1, 128, 128>}, {transform_indices = @transform_11, window_bounds = array<i64: 1, 1, 128, 128>}]} {
    %c0 = arith.constant 0 : index
    %c0_0 = arith.constant 0 : index
    %c0_1 = arith.constant 0 : index
    %0 = vector.load %arg3[%c0, %c0_0, %c0_1] : memref<1x128x256xf32, #tpu.memory_space<vmem>>, vector<1x128x256xf32>
    %1 = vector.shape_cast %0 : vector<1x128x256xf32> to vector<128x256xf32>
    %2 = arith.truncf %1 : vector<128x256xf32> to vector<128x256xbf16>
    %c0_2 = arith.constant 0 : index
    %c0_3 = arith.constant 0 : index
    %c0_4 = arith.constant 0 : index
    %3 = vector.load %arg6[%c0_2, %c0_3, %c0_4] : memref<1x256x128xbf16, #tpu.memory_space<vmem>>, vector<1x256x128xbf16>
    %4 = vector.shape_cast %3 : vector<1x256x128xbf16> to vector<256x128xbf16>
    %cst = arith.constant dense<0.000000e+00> : vector<128x128xf32>
    %5 = tpu.matmul %2, %4, %cst {dimension_numbers = #tpu.dot_dimension_numbers<[1], [0], [0], [1], [0, 0, 1, 1], [], []>} : vector<128x256xbf16>, vector<256x128xbf16>, vector<128x128xf32> -> vector<128x128xf32>
    %c0_5 = arith.constant 0 : index
    %c0_6 = arith.constant 0 : index
    %c0_7 = arith.constant 0 : index
    %6 = vector.load %arg7[%c0_5, %c0_6, %c0_7] : memref<1x1x128xf32, #tpu.memory_space<vmem>>, vector<1x1x128xf32>
    %7 = vector.shape_cast %6 : vector<1x1x128xf32> to vector<1x128xf32>
    %8 = vector.broadcast %7 : vector<1x128xf32> to vector<128x128xf32>
    %9 = arith.addf %5, %8 : vector<128x128xf32>
    %10 = arith.truncf %9 : vector<128x128xf32> to vector<128x128xbf16>
    %c0_8 = arith.constant 0 : index
    %c0_9 = arith.constant 0 : index
    %c0_10 = arith.constant 0 : index
    %c0_11 = arith.constant 0 : index
    %11 = vector.load %arg12[%c0_8, %c0_9, %c0_10, %c0_11] : memref<1x1x128x128xbf16, #tpu.memory_space<vmem>>, vector<1x1x128x128xbf16>
    %12 = vector.shape_cast %11 : vector<1x1x128x128xbf16> to vector<128x128xbf16>
    %13 = vector.shape_cast %10 : vector<128x128xbf16> to vector<1x1x128x128xbf16>
    tpu.vector_store %arg12[%c0_8, %c0_9, %c0_10, %c0_11], %13 {strides = array<i32>} : memref<1x1x128x128xbf16, #tpu.memory_space<vmem>>, vector<1x1x128x128xbf16>,
    %c0_12 = arith.constant 0 : index
    %c0_13 = arith.constant 0 : index
    %c0_14 = arith.constant 0 : index
    %14 = vector.load %arg4[%c0_12, %c0_13, %c0_14] : memref<1x128x256xf32, #tpu.memory_space<vmem>>, vector<1x128x256xf32>
    %15 = vector.shape_cast %14 : vector<1x128x256xf32> to vector<128x256xf32>
    %16 = arith.truncf %15 : vector<128x256xf32> to vector<128x256xbf16>
    %c0_15 = arith.constant 0 : index
    %c0_16 = arith.constant 0 : index
    %c0_17 = arith.constant 0 : index
    %17 = vector.load %arg8[%c0_15, %c0_16, %c0_17] : memref<1x256x128xbf16, #tpu.memory_space<vmem>>, vector<1x256x128xbf16>
    %18 = vector.shape_cast %17 : vector<1x256x128xbf16> to vector<256x128xbf16>
    %cst_18 = arith.constant dense<0.000000e+00> : vector<128x128xf32>
    %19 = tpu.matmul %16, %18, %cst_18 {dimension_numbers = #tpu.dot_dimension_numbers<[1], [0], [0], [1], [0, 0, 1, 1], [], []>} : vector<128x256xbf16>, vector<256x128xbf16>, vector<128x128xf32> -> vector<128x128xf32>
    %c0_19 = arith.constant 0 : index
    %c0_20 = arith.constant 0 : index
    %c0_21 = arith.constant 0 : index
    %20 = vector.load %arg9[%c0_19, %c0_20, %c0_21] : memref<1x1x128xf32, #tpu.memory_space<vmem>>, vector<1x1x128xf32>
    %21 = vector.shape_cast %20 : vector<1x1x128xf32> to vector<1x128xf32>
    %22 = vector.broadcast %21 : vector<1x128xf32> to vector<128x128xf32>
    %23 = arith.addf %19, %22 : vector<128x128xf32>
    %24 = arith.truncf %23 : vector<128x128xf32> to vector<128x128xbf16>
    %c0_22 = arith.constant 0 : index
    %c0_23 = arith.constant 0 : index
    %c0_24 = arith.constant 0 : index
    %c0_25 = arith.constant 0 : index
    %25 = vector.load %arg13[%c0_22, %c0_23, %c0_24, %c0_25] : memref<1x1x128x128xbf16, #tpu.memory_space<vmem>>, vector<1x1x128x128xbf16>
    %26 = vector.shape_cast %25 : vector<1x1x128x128xbf16> to vector<128x128xbf16>
    %27 = vector.shape_cast %24 : vector<128x128xbf16> to vector<1x1x128x128xbf16>
    tpu.vector_store %arg13[%c0_22, %c0_23, %c0_24, %c0_25], %27 {strides = array<i32>} : memref<1x1x128x128xbf16, #tpu.memory_space<vmem>>, vector<1x1x128x128xbf16>,
    %c0_26 = arith.constant 0 : index
    %c0_27 = arith.constant 0 : index
    %c0_28 = arith.constant 0 : index
    %28 = vector.load %arg5[%c0_26, %c0_27, %c0_28] : memref<1x128x256xf32, #tpu.memory_space<vmem>>, vector<1x128x256xf32>
    %29 = vector.shape_cast %28 : vector<1x128x256xf32> to vector<128x256xf32>
    %30 = arith.truncf %29 : vector<128x256xf32> to vector<128x256xbf16>
    %c0_29 = arith.constant 0 : index
    %c0_30 = arith.constant 0 : index
    %c0_31 = arith.constant 0 : index
    %31 = vector.load %arg10[%c0_29, %c0_30, %c0_31] : memref<1x256x128xbf16, #tpu.memory_space<vmem>>, vector<1x256x128xbf16>
    %32 = vector.shape_cast %31 : vector<1x256x128xbf16> to vector<256x128xbf16>
    %cst_32 = arith.constant dense<0.000000e+00> : vector<128x128xf32>
    %33 = tpu.matmul %30, %32, %cst_32 {dimension_numbers = #tpu.dot_dimension_numbers<[1], [0], [0], [1], [0, 0, 1, 1], [], []>} : vector<128x256xbf16>, vector<256x128xbf16>, vector<128x128xf32> -> vector<128x128xf32>
    %c0_33 = arith.constant 0 : index
    %c0_34 = arith.constant 0 : index
    %c0_35 = arith.constant 0 : index
    %34 = vector.load %arg11[%c0_33, %c0_34, %c0_35] : memref<1x1x128xf32, #tpu.memory_space<vmem>>, vector<1x1x128xf32>
    %35 = vector.shape_cast %34 : vector<1x1x128xf32> to vector<1x128xf32>
    %36 = vector.broadcast %35 : vector<1x128xf32> to vector<128x128xf32>
    %37 = arith.addf %33, %36 : vector<128x128xf32>
    %38 = arith.truncf %37 : vector<128x128xf32> to vector<128x128xbf16>
    %c0_36 = arith.constant 0 : index
    %c0_37 = arith.constant 0 : index
    %c0_38 = arith.constant 0 : index
    %c0_39 = arith.constant 0 : index
    %39 = vector.load %arg14[%c0_36, %c0_37, %c0_38, %c0_39] : memref<1x1x128x128xbf16, #tpu.memory_space<vmem>>, vector<1x1x128x128xbf16>
    %40 = vector.shape_cast %39 : vector<1x1x128x128xbf16> to vector<128x128xbf16>
    %41 = vector.shape_cast %38 : vector<128x128xbf16> to vector<1x1x128x128xbf16>
    tpu.vector_store %arg14[%c0_36, %c0_37, %c0_38, %c0_39], %41 {strides = array<i32>} : memref<1x1x128x128xbf16, #tpu.memory_space<vmem>>, vector<1x1x128x128xbf16>,
    return
  }
  func.func @transform_0(%arg0: i32, %arg1: i32, %arg2: i32) -> (i32, i32, i32) {
    %c0_i32 = arith.constant 0 : i32
    %c0_i32_0 = arith.constant 0 : i32
    return %arg0, %arg1, %c0_i32 : i32, i32, i32
  }
  func.func @transform_1(%arg0: i32, %arg1: i32, %arg2: i32) -> (i32, i32, i32) {
    %c0_i32 = arith.constant 0 : i32
    %c0_i32_0 = arith.constant 0 : i32
    return %arg0, %arg1, %c0_i32 : i32, i32, i32
  }
  func.func @transform_2(%arg0: i32, %arg1: i32, %arg2: i32) -> (i32, i32, i32) {
    %c0_i32 = arith.constant 0 : i32
    %c0_i32_0 = arith.constant 0 : i32
    return %arg0, %arg1, %c0_i32 : i32, i32, i32
  }
  func.func @transform_3(%arg0: i32, %arg1: i32, %arg2: i32) -> (i32, i32, i32) {
    %c0_i32 = arith.constant 0 : i32
    %c0_i32_0 = arith.constant 0 : i32
    %c0_i32_1 = arith.constant 0 : i32
    return %arg2, %c0_i32, %c0_i32_0 : i32, i32, i32
  }
  func.func @transform_4(%arg0: i32, %arg1: i32, %arg2: i32) -> (i32, i32, i32) {
    %c0_i32 = arith.constant 0 : i32
    %c0_i32_0 = arith.constant 0 : i32
    %c0_i32_1 = arith.constant 0 : i32
    return %arg2, %c0_i32, %c0_i32_0 : i32, i32, i32
  }
  func.func @transform_5(%arg0: i32, %arg1: i32, %arg2: i32) -> (i32, i32, i32) {
    %c0_i32 = arith.constant 0 : i32
    %c0_i32_0 = arith.constant 0 : i32
    %c0_i32_1 = arith.constant 0 : i32
    return %arg2, %c0_i32, %c0_i32_0 : i32, i32, i32
  }
  func.func @transform_6(%arg0: i32, %arg1: i32, %arg2: i32) -> (i32, i32, i32) {
    %c0_i32 = arith.constant 0 : i32
    %c0_i32_0 = arith.constant 0 : i32
    %c0_i32_1 = arith.constant 0 : i32
    return %arg2, %c0_i32, %c0_i32_0 : i32, i32, i32
  }
  func.func @transform_7(%arg0: i32, %arg1: i32, %arg2: i32) -> (i32, i32, i32) {
    %c0_i32 = arith.constant 0 : i32
    %c0_i32_0 = arith.constant 0 : i32
    %c0_i32_1 = arith.constant 0 : i32
    return %arg2, %c0_i32, %c0_i32_0 : i32, i32, i32
  }
  func.func @transform_8(%arg0: i32, %arg1: i32, %arg2: i32) -> (i32, i32, i32) {
    %c0_i32 = arith.constant 0 : i32
    %c0_i32_0 = arith.constant 0 : i32
    %c0_i32_1 = arith.constant 0 : i32
    return %arg2, %c0_i32, %c0_i32_0 : i32, i32, i32
  }
  func.func @transform_9(%arg0: i32, %arg1: i32, %arg2: i32) -> (i32, i32, i32, i32) {
    %c0_i32 = arith.constant 0 : i32
    %c0_i32_0 = arith.constant 0 : i32
    return %arg0, %arg2, %arg1, %c0_i32 : i32, i32, i32, i32
  }
  func.func @transform_10(%arg0: i32, %arg1: i32, %arg2: i32) -> (i32, i32, i32, i32) {
    %c0_i32 = arith.constant 0 : i32
    %c0_i32_0 = arith.constant 0 : i32
    return %arg0, %arg2, %arg1, %c0_i32 : i32, i32, i32, i32
  }
  func.func @transform_11(%arg0: i32, %arg1: i32, %arg2: i32) -> (i32, i32, i32, i32) {
    %c0_i32 = arith.constant 0 : i32
    %c0_i32_0 = arith.constant 0 : i32
    return %arg0, %arg2, %arg1, %c0_i32 : i32, i32, i32, i32
  }
}

</mosaic_0001>

<llo_original>
// kernel: tpu_custom_call.1
$region0: #{tpu_custom_call.1}
  #allocation0 [shape = 'u32[]', space=smem, size = 0x4, offset = 0x4, fixed_abs, tag = 'smem constant byte address 0x4 - core index']
  #allocation1 [shape = 'u32[144,128]{1,0:T(1,128)}', space=vmem, size = 0x12000, scoped, tag = 'internal scratch']
  %s0 = inlined_call_operand.hbm [shape: f32[2,256,256], index: 0, kind: input, shape index: {}]
  %s1 = inlined_call_operand.hbm [shape: f32[2,256,256], index: 1, kind: input, shape index: {}]
  %s2 = inlined_call_operand.hbm [shape: f32[2,256,256], index: 2, kind: input, shape index: {}]
  %s3 = inlined_call_operand.hbm [shape: bf16[2,256,128], index: 3, kind: input, shape index: {}]
  %s4 = inlined_call_operand.vmem [shape: f32[2,1,128], index: 4, kind: input, shape index: {}]
  %s5 = inlined_call_operand.hbm [shape: bf16[2,256,128], index: 5, kind: input, shape index: {}]
  %s6 = inlined_call_operand.vmem [shape: f32[2,1,128], index: 6, kind: input, shape index: {}]
  %s7 = inlined_call_operand.hbm [shape: bf16[2,256,128], index: 7, kind: input, shape index: {}]
  %s8 = inlined_call_operand.vmem [shape: f32[2,1,128], index: 8, kind: input, shape index: {}]
  %s9 = inlined_call_operand.hbm [shape: bf16[2,2,256,128], index: 9, kind: output, shape index: {0}]
  %s10 = inlined_call_operand.hbm [shape: bf16[2,2,256,128], index: 10, kind: output, shape index: {1}]
  %s11 = inlined_call_operand.hbm [shape: bf16[2,2,256,128], index: 11, kind: output, shape index: {2}]
  %12 = xla_tuple %s9, %s10, %s11
  %s13 = sld [smem:[#allocation0]]
  $region109: #{tpu_custom_call.1} parent=0
    _
  %s15 = ssub.s32 1, %s13
  %s16 = scalar_select 0, %s15, %s13
  $region1: #{tpu_custom_call.1} parent=0
    #allocation2 [shape = 'u8[262144]{0}', space=vmem, size = 0x40000, scoped, tag = 'input window, operand 0']
    #allocation3 [shape = 's32[2]{0}', space=sflag, size = 0x8, scoped, tag = 'scoped memory for tpu_custom_call.1']
    #allocation4 [shape = 's32[2]{0}', space=sflag, size = 0x8, scoped, tag = 'scoped memory for tpu_custom_call.1']
    #allocation5 [shape = 'u8[262144]{0}', space=vmem, size = 0x40000, scoped, tag = 'input window, operand 1']
    #allocation6 [shape = 's32[2]{0}', space=sflag, size = 0x8, scoped, tag = 'scoped memory for tpu_custom_call.1']
    #allocation7 [shape = 'u8[262144]{0}', space=vmem, size = 0x40000, scoped, tag = 'input window, operand 2']
    #allocation8 [shape = 'u8[131072]{0}', space=vmem, size = 0x20000, scoped, tag = 'input window, operand 3']
    #allocation9 [shape = 's32[2]{0}', space=sflag, size = 0x8, scoped, tag = 'scoped memory for tpu_custom_call.1']
    #allocation10 [shape = 'u8[131072]{0}', space=vmem, size = 0x20000, scoped, tag = 'input window, operand 5']
    #allocation11 [shape = 'u8[131072]{0}', space=vmem, size = 0x20000, scoped, tag = 'input window, operand 7']
    #allocation12 [shape = 's32[2]{0}', space=sflag, size = 0x8, scoped, tag = 'scoped memory for tpu_custom_call.1']
    #allocation13 [shape = 'u8[65536]{0}', space=vmem, size = 0x10000, scoped, tag = 'output window, operand 0']
    #allocation14 [shape = 'u8[65536]{0}', space=vmem, size = 0x10000, scoped, tag = 'output window, operand 1']
    #allocation15 [shape = 's32[2]{0}', space=sflag, size = 0x8, scoped, tag = 'scoped memory for tpu_custom_call.1']
    #allocation16 [shape = 'u8[65536]{0}', space=vmem, size = 0x10000, scoped, tag = 'output window, operand 2']
    %17 = vsyncpa [#allocation3], 0
    %s18 = scalar_lea.sflag [#allocation3], 1
    %19 = vsyncpa %s18, 0
    %20 = vsyncpa [#allocation6], 0
    %s21 = scalar_lea.sflag [#allocation6], 1
    %22 = vsyncpa %s21, 0
    %23 = vsyncpa [#allocation9], 0
    %s24 = scalar_lea.sflag [#allocation9], 1
    %25 = vsyncpa %s24, 0
    %26 = vsyncpa [#allocation12], 0
    %s27 = scalar_lea.sflag [#allocation12], 1
    %28 = vsyncpa %s27, 0
    %29 = vsyncpa [#allocation4], 0
    %s30 = scalar_lea.sflag [#allocation4], 1
    %31 = vsyncpa %s30, 0
    %32 = vsyncpa [#allocation15], 0
    %s33 = scalar_lea.sflag [#allocation15], 1
    %34 = vsyncpa %s33, 0
    loop: start=0, step=1, limit=10
    $region2: #{tpu_custom_call.1} parent=1 // loop_pre_header
      _
    $region3: #{tpu_custom_call.1} parent=1 // loop_header
      %s36 = sphi 0, %s40
      %p37 = scmp.ge.s32.totalorder %s36, 10
      %s43 = sphi 0, %s62
      %s44 = sphi 0, %s58
      %s45 = sphi 0, %s54
      %s46 = sphi 0, %s43
      %s47 = sphi 0, %s44
      %s48 = sphi 0, %s45
      %s49 = sphi 0, %s46
      %s50 = sphi 0, %s47
      %s51 = sphi 0, %s48
      %s67 = sphi 0, %s69
      %s70 = sphi 0, %s67
      %s71 = sphi 0, %s70
      %s87 = sphi 0, %s71
      %s95 = sphi 0, %s97
      %s98 = sphi 0, %s95
      %s99 = sphi 0, %s98
      %s115 = sphi 0, %s99
      %s123 = sphi 0, %s125
      %s126 = sphi 0, %s123
      %s127 = sphi 0, %s126
      %s143 = sphi 0, %s127
      %s149 = sphi 0, %s151
      %s152 = sphi 0, %s149
      %s153 = sphi 0, %s152
      %s169 = sphi 0, %s153
      %s175 = sphi 0, %s177
      %s178 = sphi 0, %s175
      %s179 = sphi 0, %s178
      %s195 = sphi 0, %s179
      %s201 = sphi 0, %s203
      %s204 = sphi 0, %s201
      %s205 = sphi 0, %s204
      %s221 = sphi 0, %s205
      %s227 = sphi 0, %s229
      %s230 = sphi 0, %s227
      %s231 = sphi 0, %s230
      %s247 = sphi 0, %s231
      %s253 = sphi 0, %s255
      %s256 = sphi 0, %s253
      %s257 = sphi 0, %s256
      %s273 = sphi 0, %s257
      %s279 = sphi 0, %s281
      %s282 = sphi 0, %s279
      %s283 = sphi 0, %s282
      %s299 = sphi 0, %s283
      %s309 = sphi 0, %s311
      %s312 = sphi 0, %s309
      %s313 = sphi 0, %s312
      %s329 = sphi 0, %s313
      %s339 = sphi 0, %s341
      %s342 = sphi 0, %s339
      %s343 = sphi 0, %s342
      %s359 = sphi 0, %s343
      %s369 = sphi 0, %s371
      %s372 = sphi 0, %s369
      %s373 = sphi 0, %s372
      %s389 = sphi 0, %s373
    $region4: #{tpu_custom_call.1} parent=1 // loop_header_branch
      %39 = sbr.rel (%p37) target = $region8
    $region5: #{tpu_custom_call.1} parent=1 // loop_body
      %s41 = ssub.s32 %s36, 1
      %s42 = ssub.s32 %s36, 2
      %s52 = sadd.s32 1, %s45
      %p53 = scmp.ge.s32.totalorder %s52, 2
      %s54 = scalar_select %p53, 0, %s52
      %s55 = sadd.s32 1, %s44
      %s56 = scalar_select %p53, %s55, %s44
      %p57 = scmp.ge.s32.totalorder %s56, 2
      %s58 = scalar_select %p57, 0, %s56
      %s59 = sadd.s32 1, %s43
      %s60 = scalar_select %p57, %s59, %s43
      %p61 = scmp.ge.s32.totalorder %s60, 2
      %s62 = scalar_select %p61, 0, %s60
      %s63 = ssub.s32 %s43, %s62
      %s64 = ssub.s32 %s44, %s58
      %s65 = sor.u32 %s63, %s64
      %p66 = scmp.eq.s32.totalorder %s65, 0
      %s68 = sadd.s32 %s67, 1
      %s69 = scalar_select %p66, %s67, %s68
      %p72 = pneg %p66
      %p73 = scmp.eq.s32.totalorder %s36, 7
      %p74 = por %p72, %p73
      %p75 = scmp.ne.s32.totalorder %s67, %s70
      %p76 = scmp.eq.s32.totalorder %s36, 0
      %p77 = por %p75, %p76
      %p78 = scmp.ne.s32.totalorder %s67, %s70
      %p79 = scmp.eq.s32.totalorder %s41, 7
      %p80 = por %p78, %p79
      %p81 = scmp.ne.s32.totalorder %s70, %s71
      %p82 = scmp.eq.s32.totalorder %s41, 0
      %p83 = por %p81, %p82
      %p84 = scmp.ne.s32.totalorder %s70, %s71
      %p85 = scmp.eq.s32.totalorder %s42, 7
      %p86 = por %p84, %p85
      %p88 = scmp.ne.s32.totalorder %s71, %s87
      %p89 = scmp.eq.s32.totalorder %s42, 0
      %p90 = por %p88, %p89
      %s91 = ssub.s32 %s43, %s62
      %s92 = ssub.s32 %s44, %s58
      %s93 = sor.u32 %s91, %s92
      %p94 = scmp.eq.s32.totalorder %s93, 0
      %s96 = sadd.s32 %s95, 1
      %s97 = scalar_select %p94, %s95, %s96
      %p100 = pneg %p94
      %p101 = scmp.eq.s32.totalorder %s36, 7
      %p102 = por %p100, %p101
      %p103 = scmp.ne.s32.totalorder %s95, %s98
      %p104 = scmp.eq.s32.totalorder %s36, 0
      %p105 = por %p103, %p104
      %p106 = scmp.ne.s32.totalorder %s95, %s98
      %p107 = scmp.eq.s32.totalorder %s41, 7
      %p108 = por %p106, %p107
      %p109 = scmp.ne.s32.totalorder %s98, %s99
      %p110 = scmp.eq.s32.totalorder %s41, 0
      %p111 = por %p109, %p110
      %p112 = scmp.ne.s32.totalorder %s98, %s99
      %p113 = scmp.eq.s32.totalorder %s42, 7
      %p114 = por %p112, %p113
      %p116 = scmp.ne.s32.totalorder %s99, %s115
      %p117 = scmp.eq.s32.totalorder %s42, 0
      %p118 = por %p116, %p117
      %s119 = ssub.s32 %s43, %s62
      %s120 = ssub.s32 %s44, %s58
      %s121 = sor.u32 %s119, %s120
      %p122 = scmp.eq.s32.totalorder %s121, 0
      %s124 = sadd.s32 %s123, 1
      %s125 = scalar_select %p122, %s123, %s124
      %p128 = pneg %p122
      %p129 = scmp.eq.s32.totalorder %s36, 7
      %p130 = por %p128, %p129
      %p131 = scmp.ne.s32.totalorder %s123, %s126
      %p132 = scmp.eq.s32.totalorder %s36, 0
      %p133 = por %p131, %p132
      %p134 = scmp.ne.s32.totalorder %s123, %s126
      %p135 = scmp.eq.s32.totalorder %s41, 7
      %p136 = por %p134, %p135
      %p137 = scmp.ne.s32.totalorder %s126, %s127
      %p138 = scmp.eq.s32.totalorder %s41, 0
      %p139 = por %p137, %p138
      %p140 = scmp.ne.s32.totalorder %s126, %s127
      %p141 = scmp.eq.s32.totalorder %s42, 7
      %p142 = por %p140, %p141
      %p144 = scmp.ne.s32.totalorder %s127, %s143
      %p145 = scmp.eq.s32.totalorder %s42, 0
      %p146 = por %p144, %p145
      %s147 = ssub.s32 %s45, %s54
      %p148 = scmp.eq.s32.totalorder %s147, 0
      %s150 = sadd.s32 %s149, 1
      %s151 = scalar_select %p148, %s149, %s150
      %p154 = pneg %p148
      %p155 = scmp.eq.s32.totalorder %s36, 7
      %p156 = por %p154, %p155
      %p157 = scmp.ne.s32.totalorder %s149, %s152
      %p158 = scmp.eq.s32.totalorder %s36, 0
      %p159 = por %p157, %p158
      %p160 = scmp.ne.s32.totalorder %s149, %s152
      %p161 = scmp.eq.s32.totalorder %s41, 7
      %p162 = por %p160, %p161
      %p163 = scmp.ne.s32.totalorder %s152, %s153
      %p164 = scmp.eq.s32.totalorder %s41, 0
      %p165 = por %p163, %p164
      %p166 = scmp.ne.s32.totalorder %s152, %s153
      %p167 = scmp.eq.s32.totalorder %s42, 7
      %p168 = por %p166, %p167
      %p170 = scmp.ne.s32.totalorder %s153, %s169
      %p171 = scmp.eq.s32.totalorder %s42, 0
      %p172 = por %p170, %p171
      %s173 = ssub.s32 %s45, %s54
      %p174 = scmp.eq.s32.totalorder %s173, 0
      %s176 = sadd.s32 %s175, 1
      %s177 = scalar_select %p174, %s175, %s176
      %p180 = pneg %p174
      %p181 = scmp.eq.s32.totalorder %s36, 7
      %p182 = por %p180, %p181
      %p183 = scmp.ne.s32.totalorder %s175, %s178
      %p184 = scmp.eq.s32.totalorder %s36, 0
      %p185 = por %p183, %p184
      %p186 = scmp.ne.s32.totalorder %s175, %s178
      %p187 = scmp.eq.s32.totalorder %s41, 7
      %p188 = por %p186, %p187
      %p189 = scmp.ne.s32.totalorder %s178, %s179
      %p190 = scmp.eq.s32.totalorder %s41, 0
      %p191 = por %p189, %p190
      %p192 = scmp.ne.s32.totalorder %s178, %s179
      %p193 = scmp.eq.s32.totalorder %s42, 7
      %p194 = por %p192, %p193
      %p196 = scmp.ne.s32.totalorder %s179, %s195
      %p197 = scmp.eq.s32.totalorder %s42, 0
      %p198 = por %p196, %p197
      %s199 = ssub.s32 %s45, %s54
      %p200 = scmp.eq.s32.totalorder %s199, 0
      %s202 = sadd.s32 %s201, 1
      %s203 = scalar_select %p200, %s201, %s202
      %p206 = pneg %p200
      %p207 = scmp.eq.s32.totalorder %s36, 7
      %p208 = por %p206, %p207
      %p209 = scmp.ne.s32.totalorder %s201, %s204
      %p210 = scmp.eq.s32.totalorder %s36, 0
      %p211 = por %p209, %p210
      %p212 = scmp.ne.s32.totalorder %s201, %s204
      %p213 = scmp.eq.s32.totalorder %s41, 7
      %p214 = por %p212, %p213
      %p215 = scmp.ne.s32.totalorder %s204, %s205
      %p216 = scmp.eq.s32.totalorder %s41, 0
      %p217 = por %p215, %p216
      %p218 = scmp.ne.s32.totalorder %s204, %s205
      %p219 = scmp.eq.s32.totalorder %s42, 7
      %p220 = por %p218, %p219
      %p222 = scmp.ne.s32.totalorder %s205, %s221
      %p223 = scmp.eq.s32.totalorder %s42, 0
      %p224 = por %p222, %p223
      %s225 = ssub.s32 %s45, %s54
      %p226 = scmp.eq.s32.totalorder %s225, 0
      %s228 = sadd.s32 %s227, 1
      %s229 = scalar_select %p226, %s227, %s228
      %p232 = pneg %p226
      %p233 = scmp.eq.s32.totalorder %s36, 7
      %p234 = por %p232, %p233
      %p235 = scmp.ne.s32.totalorder %s227, %s230
      %p236 = scmp.eq.s32.totalorder %s36, 0
      %p237 = por %p235, %p236
      %p238 = scmp.ne.s32.totalorder %s227, %s230
      %p239 = scmp.eq.s32.totalorder %s41, 7
      %p240 = por %p238, %p239
      %p241 = scmp.ne.s32.totalorder %s230, %s231
      %p242 = scmp.eq.s32.totalorder %s41, 0
      %p243 = por %p241, %p242
      %p244 = scmp.ne.s32.totalorder %s230, %s231
      %p245 = scmp.eq.s32.totalorder %s42, 7
      %p246 = por %p244, %p245
      %p248 = scmp.ne.s32.totalorder %s231, %s247
      %p249 = scmp.eq.s32.totalorder %s42, 0
      %p250 = por %p248, %p249
      %s251 = ssub.s32 %s45, %s54
      %p252 = scmp.eq.s32.totalorder %s251, 0
      %s254 = sadd.s32 %s253, 1
      %s255 = scalar_select %p252, %s253, %s254
      %p258 = pneg %p252
      %p259 = scmp.eq.s32.totalorder %s36, 7
      %p260 = por %p258, %p259
      %p261 = scmp.ne.s32.totalorder %s253, %s256
      %p262 = scmp.eq.s32.totalorder %s36, 0
      %p263 = por %p261, %p262
      %p264 = scmp.ne.s32.totalorder %s253, %s256
      %p265 = scmp.eq.s32.totalorder %s41, 7
      %p266 = por %p264, %p265
      %p267 = scmp.ne.s32.totalorder %s256, %s257
      %p268 = scmp.eq.s32.totalorder %s41, 0
      %p269 = por %p267, %p268
      %p270 = scmp.ne.s32.totalorder %s256, %s257
      %p271 = scmp.eq.s32.totalorder %s42, 7
      %p272 = por %p270, %p271
      %p274 = scmp.ne.s32.totalorder %s257, %s273
      %p275 = scmp.eq.s32.totalorder %s42, 0
      %p276 = por %p274, %p275
      %s277 = ssub.s32 %s45, %s54
      %p278 = scmp.eq.s32.totalorder %s277, 0
      %s280 = sadd.s32 %s279, 1
      %s281 = scalar_select %p278, %s279, %s280
      %p284 = pneg %p278
      %p285 = scmp.eq.s32.totalorder %s36, 7
      %p286 = por %p284, %p285
      %p287 = scmp.ne.s32.totalorder %s279, %s282
      %p288 = scmp.eq.s32.totalorder %s36, 0
      %p289 = por %p287, %p288
      %p290 = scmp.ne.s32.totalorder %s279, %s282
      %p291 = scmp.eq.s32.totalorder %s41, 7
      %p292 = por %p290, %p291
      %p293 = scmp.ne.s32.totalorder %s282, %s283
      %p294 = scmp.eq.s32.totalorder %s41, 0
      %p295 = por %p293, %p294
      %p296 = scmp.ne.s32.totalorder %s282, %s283
      %p297 = scmp.eq.s32.totalorder %s42, 7
      %p298 = por %p296, %p297
      %p300 = scmp.ne.s32.totalorder %s283, %s299
      %p301 = scmp.eq.s32.totalorder %s42, 0
      %p302 = por %p300, %p301
      %s303 = ssub.s32 %s43, %s62
      %s304 = ssub.s32 %s45, %s54
      %s305 = sor.u32 %s303, %s304
      %s306 = ssub.s32 %s44, %s58
      %s307 = sor.u32 %s305, %s306
      %p308 = scmp.eq.s32.totalorder %s307, 0
      %s310 = sadd.s32 %s309, 1
      %s311 = scalar_select %p308, %s309, %s310
      %p314 = pneg %p308
      %p315 = scmp.eq.s32.totalorder %s36, 7
      %p316 = por %p314, %p315
      %p317 = scmp.ne.s32.totalorder %s309, %s312
      %p318 = scmp.eq.s32.totalorder %s36, 0
      %p319 = por %p317, %p318
      %p320 = scmp.ne.s32.totalorder %s309, %s312
      %p321 = scmp.eq.s32.totalorder %s41, 7
      %p322 = por %p320, %p321
      %p323 = scmp.ne.s32.totalorder %s312, %s313
      %p324 = scmp.eq.s32.totalorder %s41, 0
      %p325 = por %p323, %p324
      %p326 = scmp.ne.s32.totalorder %s312, %s313
      %p327 = scmp.eq.s32.totalorder %s42, 7
      %p328 = por %p326, %p327
      %p330 = scmp.ne.s32.totalorder %s313, %s329
      %p331 = scmp.eq.s32.totalorder %s42, 0
      %p332 = por %p330, %p331
      %s333 = ssub.s32 %s43, %s62
      %s334 = ssub.s32 %s45, %s54
      %s335 = sor.u32 %s333, %s334
      %s336 = ssub.s32 %s44, %s58
      %s337 = sor.u32 %s335, %s336
      %p338 = scmp.eq.s32.totalorder %s337, 0
      %s340 = sadd.s32 %s339, 1
      %s341 = scalar_select %p338, %s339, %s340
      %p344 = pneg %p338
      %p345 = scmp.eq.s32.totalorder %s36, 7
      %p346 = por %p344, %p345
      %p347 = scmp.ne.s32.totalorder %s339, %s342
      %p348 = scmp.eq.s32.totalorder %s36, 0
      %p349 = por %p347, %p348
      %p350 = scmp.ne.s32.totalorder %s339, %s342
      %p351 = scmp.eq.s32.totalorder %s41, 7
      %p352 = por %p350, %p351
      %p353 = scmp.ne.s32.totalorder %s342, %s343
      %p354 = scmp.eq.s32.totalorder %s41, 0
      %p355 = por %p353, %p354
      %p356 = scmp.ne.s32.totalorder %s342, %s343
      %p357 = scmp.eq.s32.totalorder %s42, 7
      %p358 = por %p356, %p357
      %p360 = scmp.ne.s32.totalorder %s343, %s359
      %p361 = scmp.eq.s32.totalorder %s42, 0
      %p362 = por %p360, %p361
      %s363 = ssub.s32 %s43, %s62
      %s364 = ssub.s32 %s45, %s54
      %s365 = sor.u32 %s363, %s364
      %s366 = ssub.s32 %s44, %s58
      %s367 = sor.u32 %s365, %s366
      %p368 = scmp.eq.s32.totalorder %s367, 0
      %s370 = sadd.s32 %s369, 1
      %s371 = scalar_select %p368, %s369, %s370
      %p374 = pneg %p368
      %p375 = scmp.eq.s32.totalorder %s36, 7
      %p376 = por %p374, %p375
      %p377 = scmp.ne.s32.totalorder %s369, %s372
      %p378 = scmp.eq.s32.totalorder %s36, 0
      %p379 = por %p377, %p378
      %p380 = scmp.ne.s32.totalorder %s369, %s372
      %p381 = scmp.eq.s32.totalorder %s41, 7
      %p382 = por %p380, %p381
      %p383 = scmp.ne.s32.totalorder %s372, %s373
      %p384 = scmp.eq.s32.totalorder %s41, 0
      %p385 = por %p383, %p384
      %p386 = scmp.ne.s32.totalorder %s372, %s373
      %p387 = scmp.eq.s32.totalorder %s42, 7
      %p388 = por %p386, %p387
      %p390 = scmp.ne.s32.totalorder %s373, %s389
      %p391 = scmp.eq.s32.totalorder %s42, 0
      %p392 = por %p390, %p391
      %p393 = scmp.le.s32.totalorder 1, %s36
      %p394 = scmp.lt.s32.totalorder %s36, 9
      %p395 = pnand %p393, %p394
      %p396 = pneg %p395
      // Predicated region
      $region9: #{tpu_custom_call.1} parent=5 // pred_check
        _
      $region10: #{tpu_custom_call.1} parent=5 // pred_check_branch
        %398 = sbr.rel (%p395) target = $region12
      $region11: #{tpu_custom_call.1} parent=5 // pred_region
        %s399 = ssub.s32 %s36, 1
      $region12: #{tpu_custom_call.1} parent=5 // pred_fallthru
        _
      %p400 = scmp.lt.s32.totalorder %s36, 8
      // Predicated region
      $region13: #{tpu_custom_call.1} parent=5 // pred_check
        %p401 = pneg %p400
      $region14: #{tpu_custom_call.1} parent=5 // pred_check_branch
        %403 = sbr.rel (%p401) target = $region16
      $region15: #{tpu_custom_call.1} parent=5 // pred_region
        // Predicated region
        $region17: #{tpu_custom_call.1} parent=15 // pred_check
          %p404 = pneg %p77
        $region18: #{tpu_custom_call.1} parent=15 // pred_check_branch
          %406 = sbr.rel (%p404) target = $region20
        $region19: #{tpu_custom_call.1} parent=15 // pred_region
          %s407 = sand.u32 %s67, 1
          %s408 = scalar_lea.sflag [#allocation3], %s407
          %s409 = sand.u32 %s67, 1
          %s410 = smul.addr %s409, 256
          %s411 = scalar_lea.vmem [#allocation2], %s410
          %s412 = smul.u32 16, %s44
          %s414 = ssub.s32 4096, 4096
          %415 = vsyncadd %s408, %s414
          %s416 = smul.addr %s412, 2
          %s417 = smul.addr %s43, 64
          %s418 = sadd.s32 %s416, %s417
          %s419 = smul.addr %s418, 128
          %s420 = scalar_lea.hbm %s0, %s419
          %s421 = sshll.u32 %s411, 4
          %s422 = int_to_ptr.vmem [resolvable:$true] %s421
          %427 = dma.hbm_to_vmem [thread:$0]  %s420, 4096, %s422, %s408, 256, 256, 16
        $region20: #{tpu_custom_call.1} parent=15 // pred_fallthru
          _
        // Predicated region
        $region21: #{tpu_custom_call.1} parent=15 // pred_check
          %p428 = pneg %p105
        $region22: #{tpu_custom_call.1} parent=15 // pred_check_branch
          %430 = sbr.rel (%p428) target = $region24
        $region23: #{tpu_custom_call.1} parent=15 // pred_region
          %s431 = sand.u32 %s36, 1
          %s432 = scalar_lea.sflag [#allocation6], %s431
          %s433 = sand.u32 %s95, 1
          %s434 = smul.addr %s433, 256
          %s435 = scalar_lea.vmem [#allocation5], %s434
          %s436 = smul.u32 16, %s44
          %s438 = ssub.s32 4096, 4096
          %439 = vsyncadd %s432, %s438
          %s440 = smul.addr %s436, 2
          %s441 = smul.addr %s43, 64
          %s442 = sadd.s32 %s440, %s441
          %s443 = smul.addr %s442, 128
          %s444 = scalar_lea.hbm %s1, %s443
          %s445 = sshll.u32 %s435, 4
          %s446 = int_to_ptr.vmem [resolvable:$true] %s445
          %451 = dma.hbm_to_vmem [thread:$0]  %s444, 4096, %s446, %s432, 256, 256, 16
        $region24: #{tpu_custom_call.1} parent=15 // pred_fallthru
          _
        // Predicated region
        $region25: #{tpu_custom_call.1} parent=15 // pred_check
          %p452 = pneg %p133
        $region26: #{tpu_custom_call.1} parent=15 // pred_check_branch
          %454 = sbr.rel (%p452) target = $region28
        $region27: #{tpu_custom_call.1} parent=15 // pred_region
          %s455 = sand.u32 %s36, 1
          %s456 = scalar_lea.sflag [#allocation6], %s455
          %s457 = sand.u32 %s123, 1
          %s458 = smul.addr %s457, 256
          %s459 = scalar_lea.vmem [#allocation7], %s458
          %s460 = smul.u32 16, %s44
          %s462 = ssub.s32 4096, 4096
          %463 = vsyncadd %s456, %s462
          %s464 = smul.addr %s460, 2
          %s465 = smul.addr %s43, 64
          %s466 = sadd.s32 %s464, %s465
          %s467 = smul.addr %s466, 128
          %s468 = scalar_lea.hbm %s2, %s467
          %s469 = sshll.u32 %s459, 4
          %s470 = int_to_ptr.vmem [resolvable:$true] %s469
          %475 = dma.hbm_to_vmem [thread:$0]  %s468, 4096, %s470, %s456, 256, 256, 16
        $region28: #{tpu_custom_call.1} parent=15 // pred_fallthru
          _
        // Predicated region
        $region29: #{tpu_custom_call.1} parent=15 // pred_check
          %p476 = pneg %p159
        $region30: #{tpu_custom_call.1} parent=15 // pred_check_branch
          %478 = sbr.rel (%p476) target = $region32
        $region31: #{tpu_custom_call.1} parent=15 // pred_region
          %s479 = sand.u32 %s36, 1
          %s480 = scalar_lea.sflag [#allocation9], %s479
          %s481 = sand.u32 %s149, 1
          %s482 = smul.addr %s481, 128
          %s483 = scalar_lea.vmem [#allocation8], %s482
          %s485 = ssub.s32 2048, 2048
          %486 = vsyncadd %s480, %s485
          %s487 = smul.addr %s45, 32
          %s488 = smul.addr %s487, 64
          %s489 = scalar_lea.hbm %s3, %s488
          %s490 = sshll.u32 %s483, 4
          %s491 = int_to_ptr.vmem [resolvable:$true] %s490
          %496 = dma.hbm_to_vmem [thread:$0]  %s489, 2048, %s491, %s480, 64, 64, 4
        $region32: #{tpu_custom_call.1} parent=15 // pred_fallthru
          _
        // Predicated region
        $region33: #{tpu_custom_call.1} parent=15 // pred_check
          %p497 = pneg %p185
        $region34: #{tpu_custom_call.1} parent=15 // pred_check_branch
          %499 = sbr.rel (%p497) target = $region36
        $region35: #{tpu_custom_call.1} parent=15 // pred_region
          %p500 = scmp.lt.s32.totalorder %s45, 1
          %s501 = scalar_select %p500, %s45, 1
          %s502 = scalar_lea.vmem %s4, %s501
        $region36: #{tpu_custom_call.1} parent=15 // pred_fallthru
          _
        // Predicated region
        $region37: #{tpu_custom_call.1} parent=15 // pred_check
          %p503 = pneg %p211
        $region38: #{tpu_custom_call.1} parent=15 // pred_check_branch
          %505 = sbr.rel (%p503) target = $region40
        $region39: #{tpu_custom_call.1} parent=15 // pred_region
          %s506 = sand.u32 %s36, 1
          %s507 = scalar_lea.sflag [#allocation9], %s506
          %s508 = sand.u32 %s201, 1
          %s509 = smul.addr %s508, 128
          %s510 = scalar_lea.vmem [#allocation10], %s509
          %s512 = ssub.s32 2048, 2048
          %513 = vsyncadd %s507, %s512
          %s514 = smul.addr %s45, 32
          %s515 = smul.addr %s514, 64
          %s516 = scalar_lea.hbm %s5, %s515
          %s517 = sshll.u32 %s510, 4
          %s518 = int_to_ptr.vmem [resolvable:$true] %s517
          %523 = dma.hbm_to_vmem [thread:$0]  %s516, 2048, %s518, %s507, 64, 64, 4
        $region40: #{tpu_custom_call.1} parent=15 // pred_fallthru
          _
        // Predicated region
        $region41: #{tpu_custom_call.1} parent=15 // pred_check
          %p524 = pneg %p237
        $region42: #{tpu_custom_call.1} parent=15 // pred_check_branch
          %526 = sbr.rel (%p524) target = $region44
        $region43: #{tpu_custom_call.1} parent=15 // pred_region
          %p527 = scmp.lt.s32.totalorder %s45, 1
          %s528 = scalar_select %p527, %s45, 1
          %s529 = scalar_lea.vmem %s6, %s528
        $region44: #{tpu_custom_call.1} parent=15 // pred_fallthru
          _
        // Predicated region
        $region45: #{tpu_custom_call.1} parent=15 // pred_check
          %p530 = pneg %p263
        $region46: #{tpu_custom_call.1} parent=15 // pred_check_branch
          %532 = sbr.rel (%p530) target = $region48
        $region47: #{tpu_custom_call.1} parent=15 // pred_region
          %s533 = sand.u32 %s253, 1
          %s534 = scalar_lea.sflag [#allocation12], %s533
          %s535 = sand.u32 %s253, 1
          %s536 = smul.addr %s535, 128
          %s537 = scalar_lea.vmem [#allocation11], %s536
          %s539 = ssub.s32 2048, 2048
          %540 = vsyncadd %s534, %s539
          %s541 = smul.addr %s45, 32
          %s542 = smul.addr %s541, 64
          %s543 = scalar_lea.hbm %s7, %s542
          %s544 = sshll.u32 %s537, 4
          %s545 = int_to_ptr.vmem [resolvable:$true] %s544
          %550 = dma.hbm_to_vmem [thread:$0]  %s543, 2048, %s545, %s534, 64, 64, 4
        $region48: #{tpu_custom_call.1} parent=15 // pred_fallthru
          _
        // Predicated region
        $region49: #{tpu_custom_call.1} parent=15 // pred_check
          %p551 = pneg %p289
        $region50: #{tpu_custom_call.1} parent=15 // pred_check_branch
          %553 = sbr.rel (%p551) target = $region52
        $region51: #{tpu_custom_call.1} parent=15 // pred_region
          %p554 = scmp.lt.s32.totalorder %s45, 1
          %s555 = scalar_select %p554, %s45, 1
          %s556 = scalar_lea.vmem %s8, %s555
        $region52: #{tpu_custom_call.1} parent=15 // pred_fallthru
          _
      $region16: #{tpu_custom_call.1} parent=5 // pred_fallthru
        _
      %p557 = scmp.le.s32.totalorder 1, %s36
      %p558 = scmp.lt.s32.totalorder %s36, 9
      %p559 = pnand %p557, %p558
      %p560 = pneg %p559
      // Predicated region
      $region53: #{tpu_custom_call.1} parent=5 // pred_check
        _
      $region54: #{tpu_custom_call.1} parent=5 // pred_check_branch
        %562 = sbr.rel (%p559) target = $region56
      $region55: #{tpu_custom_call.1} parent=5 // pred_region
        %s563 = ssub.s32 %s36, 1
        %s564 = sand.u32 %s70, 1
        %s565 = scalar_lea.sflag [#allocation3], %s564
        %s566 = sand.u32 %s70, 1
        %s567 = smul.addr %s566, 256
        %s568 = scalar_lea.vmem [#allocation2], %s567
        // Predicated region
        $region57: #{tpu_custom_call.1} parent=55 // pred_check
          %p569 = pneg %p83
        $region58: #{tpu_custom_call.1} parent=55 // pred_check_branch
          %571 = sbr.rel (%p569) target = $region60
        $region59: #{tpu_custom_call.1} parent=55 // pred_region
          %572 = dma.done %s565, 4096
        $region60: #{tpu_custom_call.1} parent=55 // pred_fallthru
          _
        %s573 = sand.u32 %s41, 1
        %s574 = scalar_lea.sflag [#allocation6], %s573
        %s575 = sand.u32 %s98, 1
        %s576 = smul.addr %s575, 256
        %s577 = scalar_lea.vmem [#allocation5], %s576
        // Predicated region
        $region61: #{tpu_custom_call.1} parent=55 // pred_check
          %p578 = pneg %p111
        $region62: #{tpu_custom_call.1} parent=55 // pred_check_branch
          %580 = sbr.rel (%p578) target = $region64
        $region63: #{tpu_custom_call.1} parent=55 // pred_region
          %581 = dma.done %s574, 4096
        $region64: #{tpu_custom_call.1} parent=55 // pred_fallthru
          _
        %s582 = sand.u32 %s41, 1
        %s583 = scalar_lea.sflag [#allocation6], %s582
        %s584 = sand.u32 %s126, 1
        %s585 = smul.addr %s584, 256
        %s586 = scalar_lea.vmem [#allocation7], %s585
        // Predicated region
        $region65: #{tpu_custom_call.1} parent=55 // pred_check
          %p587 = pneg %p139
        $region66: #{tpu_custom_call.1} parent=55 // pred_check_branch
          %589 = sbr.rel (%p587) target = $region68
        $region67: #{tpu_custom_call.1} parent=55 // pred_region
          %590 = dma.done %s583, 4096
        $region68: #{tpu_custom_call.1} parent=55 // pred_fallthru
          _
        %s591 = sand.u32 %s41, 1
        %s592 = scalar_lea.sflag [#allocation9], %s591
        %s593 = sand.u32 %s152, 1
        %s594 = smul.addr %s593, 128
        %s595 = scalar_lea.vmem [#allocation8], %s594
        // Predicated region
        $region69: #{tpu_custom_call.1} parent=55 // pred_check
          %p596 = pneg %p165
        $region70: #{tpu_custom_call.1} parent=55 // pred_check_branch
          %598 = sbr.rel (%p596) target = $region72
        $region71: #{tpu_custom_call.1} parent=55 // pred_region
          %599 = dma.done %s592, 2048
        $region72: #{tpu_custom_call.1} parent=55 // pred_fallthru
          _
        %s600 = sand.u32 %s41, 1
        %s601 = scalar_lea.sflag [#allocation9], %s600
        %s602 = sand.u32 %s204, 1
        %s603 = smul.addr %s602, 128
        %s604 = scalar_lea.vmem [#allocation10], %s603
        // Predicated region
        $region73: #{tpu_custom_call.1} parent=55 // pred_check
          %p605 = pneg %p217
        $region74: #{tpu_custom_call.1} parent=55 // pred_check_branch
          %607 = sbr.rel (%p605) target = $region76
        $region75: #{tpu_custom_call.1} parent=55 // pred_region
          %608 = dma.done %s601, 2048
        $region76: #{tpu_custom_call.1} parent=55 // pred_fallthru
          _
        %s609 = sand.u32 %s256, 1
        %s610 = scalar_lea.sflag [#allocation12], %s609
        %s611 = sand.u32 %s256, 1
        %s612 = smul.addr %s611, 128
        %s613 = scalar_lea.vmem [#allocation11], %s612
        // Predicated region
        $region77: #{tpu_custom_call.1} parent=55 // pred_check
          %p614 = pneg %p269
        $region78: #{tpu_custom_call.1} parent=55 // pred_check_branch
          %616 = sbr.rel (%p614) target = $region80
        $region79: #{tpu_custom_call.1} parent=55 // pred_region
          %617 = dma.done %s610, 2048
        $region80: #{tpu_custom_call.1} parent=55 // pred_fallthru
          _
        %s618 = sand.u32 %s70, 1
        %s619 = scalar_lea.sflag [#allocation3], %s618
        %s620 = sand.u32 %s70, 1
        %s621 = smul.addr %s620, 256
        %s622 = scalar_lea.vmem [#allocation2], %s621
        %p623 = pneg %p83
        %p624 = pneg %p80
        %s625 = sand.u32 %s41, 1
        %s626 = scalar_lea.sflag [#allocation6], %s625
        %s627 = sand.u32 %s98, 1
        %s628 = smul.addr %s627, 256
        %s629 = scalar_lea.vmem [#allocation5], %s628
        %p630 = pneg %p111
        %p631 = pneg %p108
        %s632 = sand.u32 %s41, 1
        %s633 = scalar_lea.sflag [#allocation6], %s632
        %s634 = sand.u32 %s126, 1
        %s635 = smul.addr %s634, 256
        %s636 = scalar_lea.vmem [#allocation7], %s635
        %p637 = pneg %p139
        %p638 = pneg %p136
        %s639 = sand.u32 %s41, 1
        %s640 = scalar_lea.sflag [#allocation9], %s639
        %s641 = sand.u32 %s152, 1
        %s642 = smul.addr %s641, 128
        %s643 = scalar_lea.vmem [#allocation8], %s642
        %p644 = pneg %p165
        %p645 = pneg %p162
        %p646 = scmp.lt.s32.totalorder %s48, 1
        %s647 = scalar_select %p646, %s48, 1
        %s648 = scalar_lea.vmem %s4, %s647
        %p649 = pneg %p191
        %p650 = pneg %p188
        %s651 = sand.u32 %s41, 1
        %s652 = scalar_lea.sflag [#allocation9], %s651
        %s653 = sand.u32 %s204, 1
        %s654 = smul.addr %s653, 128
        %s655 = scalar_lea.vmem [#allocation10], %s654
        %p656 = pneg %p217
        %p657 = pneg %p214
        %p658 = scmp.lt.s32.totalorder %s48, 1
        %s659 = scalar_select %p658, %s48, 1
        %s660 = scalar_lea.vmem %s6, %s659
        %p661 = pneg %p243
        %p662 = pneg %p240
        %s663 = sand.u32 %s256, 1
        %s664 = scalar_lea.sflag [#allocation12], %s663
        %s665 = sand.u32 %s256, 1
        %s666 = smul.addr %s665, 128
        %s667 = scalar_lea.vmem [#allocation11], %s666
        %p668 = pneg %p269
        %p669 = pneg %p266
        %p670 = scmp.lt.s32.totalorder %s48, 1
        %s671 = scalar_select %p670, %s48, 1
        %s672 = scalar_lea.vmem %s8, %s671
        %p673 = pneg %p295
        %p674 = pneg %p292
        %p675 = pneg %p325
        %p676 = pneg %p322
        %s677 = sand.u32 %s312, 1
        %s678 = scalar_lea.sflag [#allocation4], %s677
        %s679 = sand.u32 %s312, 1
        %s680 = smul.addr %s679, 64
        %s681 = scalar_lea.vmem [#allocation13], %s680
        %p682 = pneg %p355
        %p683 = pneg %p352
        %s684 = sand.u32 %s41, 1
        %s685 = scalar_lea.sflag [#allocation15], %s684
        %s686 = sand.u32 %s342, 1
        %s687 = smul.addr %s686, 64
        %s688 = scalar_lea.vmem [#allocation14], %s687
        %p689 = pneg %p385
        %p690 = pneg %p382
        %s691 = sand.u32 %s41, 1
        %s692 = scalar_lea.sflag [#allocation15], %s691
        %s693 = sand.u32 %s372, 1
        %s694 = smul.addr %s693, 64
        %s695 = scalar_lea.vmem [#allocation16], %s694
        %s696 = smul.u32 16, %s47
        %s697 = smul.u32 16, %s47
        %s698 = smul.u32 16, %s47
        %p699 = scmp.lt.s32.totalorder %s48, 1
        %s700 = scalar_select %p699, %s48, 1
        %s701 = scalar_lea.vmem %s4, %s700
        %p702 = scmp.lt.s32.totalorder %s48, 1
        %s703 = scalar_select %p702, %s48, 1
        %s704 = scalar_lea.vmem %s6, %s703
        %p705 = scmp.lt.s32.totalorder %s48, 1
        %s706 = scalar_select %p705, %s48, 1
        %s707 = scalar_lea.vmem %s8, %s706
        %s708 = smul.u32 16, %s47
        %s709 = smul.u32 16, %s47
        %s710 = smul.u32 16, %s47
        %v712 = vld [vmem:[%s568] sm:$0xff]
        %v713 = vld [vmem:[%s568 + $0x8] sm:$0xff]
        %v714 = vld [vmem:[%s568 + $0x10] sm:$0xff]
        %v715 = vld [vmem:[%s568 + $0x18] sm:$0xff]
        %v716 = vld [vmem:[%s568 + $0x20] sm:$0xff]
        %v717 = vld [vmem:[%s568 + $0x28] sm:$0xff]
        %v718 = vld [vmem:[%s568 + $0x30] sm:$0xff]
        %v719 = vld [vmem:[%s568 + $0x38] sm:$0xff]
        %v720 = vld [vmem:[%s568 + $0x40] sm:$0xff]
        %v721 = vld [vmem:[%s568 + $0x48] sm:$0xff]
        %v722 = vld [vmem:[%s568 + $0x50] sm:$0xff]
        %v723 = vld [vmem:[%s568 + $0x58] sm:$0xff]
        %v724 = vld [vmem:[%s568 + $0x60] sm:$0xff]
        %v725 = vld [vmem:[%s568 + $0x68] sm:$0xff]
        %v726 = vld [vmem:[%s568 + $0x70] sm:$0xff]
        %v727 = vld [vmem:[%s568 + $0x78] sm:$0xff]
        %v728 = vld [vmem:[%s568 + $0x80] sm:$0xff]
        %v729 = vld [vmem:[%s568 + $0x88] sm:$0xff]
        %v730 = vld [vmem:[%s568 + $0x90] sm:$0xff]
        %v731 = vld [vmem:[%s568 + $0x98] sm:$0xff]
        %v732 = vld [vmem:[%s568 + $0xa0] sm:$0xff]
        %v733 = vld [vmem:[%s568 + $0xa8] sm:$0xff]
        %v734 = vld [vmem:[%s568 + $0xb0] sm:$0xff]
        %v735 = vld [vmem:[%s568 + $0xb8] sm:$0xff]
        %v736 = vld [vmem:[%s568 + $0xc0] sm:$0xff]
        %v737 = vld [vmem:[%s568 + $0xc8] sm:$0xff]
        %v738 = vld [vmem:[%s568 + $0xd0] sm:$0xff]
        %v739 = vld [vmem:[%s568 + $0xd8] sm:$0xff]
        %v740 = vld [vmem:[%s568 + $0xe0] sm:$0xff]
        %v741 = vld [vmem:[%s568 + $0xe8] sm:$0xff]
        %v742 = vld [vmem:[%s568 + $0xf0] sm:$0xff]
        %v743 = vld [vmem:[%s568 + $0xf8] sm:$0xff]
        %v744 = vpack.c.bf16 %v714, %v712
        %v745 = vpack.c.bf16 %v715, %v713
        %v746 = vpack.c.bf16 %v718, %v716
        %v747 = vpack.c.bf16 %v719, %v717
        %v748 = vpack.c.bf16 %v722, %v720
        %v749 = vpack.c.bf16 %v723, %v721
        %v750 = vpack.c.bf16 %v726, %v724
        %v751 = vpack.c.bf16 %v727, %v725
        %v752 = vpack.c.bf16 %v730, %v728
        %v753 = vpack.c.bf16 %v731, %v729
        %v754 = vpack.c.bf16 %v734, %v732
        %v755 = vpack.c.bf16 %v735, %v733
        %v756 = vpack.c.bf16 %v738, %v736
        %v757 = vpack.c.bf16 %v739, %v737
        %v758 = vpack.c.bf16 %v742, %v740
        %v759 = vpack.c.bf16 %v743, %v741
        %v760 = vld [vmem:[%s595] sm:$0xf]
        %v761 = vld [vmem:[%s595 + $0x4] sm:$0xf]
        %v762 = vld [vmem:[%s595 + $0x8] sm:$0xf]
        %v763 = vld [vmem:[%s595 + $0xc] sm:$0xf]
        %v764 = vld [vmem:[%s595 + $0x10] sm:$0xf]
        %v765 = vld [vmem:[%s595 + $0x14] sm:$0xf]
        %v766 = vld [vmem:[%s595 + $0x18] sm:$0xf]
        %v767 = vld [vmem:[%s595 + $0x1c] sm:$0xf]
        %v768 = vld [vmem:[%s595 + $0x20] sm:$0xf]
        %v769 = vld [vmem:[%s595 + $0x24] sm:$0xf]
        %v770 = vld [vmem:[%s595 + $0x28] sm:$0xf]
        %v771 = vld [vmem:[%s595 + $0x2c] sm:$0xf]
        %v772 = vld [vmem:[%s595 + $0x30] sm:$0xf]
        %v773 = vld [vmem:[%s595 + $0x34] sm:$0xf]
        %v774 = vld [vmem:[%s595 + $0x38] sm:$0xf]
        %v775 = vld [vmem:[%s595 + $0x3c] sm:$0xf]
        %v776 = vld [vmem:[%s595 + $0x40] sm:$0xf]
        %v777 = vld [vmem:[%s595 + $0x44] sm:$0xf]
        %v778 = vld [vmem:[%s595 + $0x48] sm:$0xf]
        %v779 = vld [vmem:[%s595 + $0x4c] sm:$0xf]
        %v780 = vld [vmem:[%s595 + $0x50] sm:$0xf]
        %v781 = vld [vmem:[%s595 + $0x54] sm:$0xf]
        %v782 = vld [vmem:[%s595 + $0x58] sm:$0xf]
        %v783 = vld [vmem:[%s595 + $0x5c] sm:$0xf]
        %v784 = vld [vmem:[%s595 + $0x60] sm:$0xf]
        %v785 = vld [vmem:[%s595 + $0x64] sm:$0xf]
        %v786 = vld [vmem:[%s595 + $0x68] sm:$0xf]
        %v787 = vld [vmem:[%s595 + $0x6c] sm:$0xf]
        %v788 = vld [vmem:[%s595 + $0x70] sm:$0xf]
        %v789 = vld [vmem:[%s595 + $0x74] sm:$0xf]
        %v790 = vld [vmem:[%s595 + $0x78] sm:$0xf]
        %v791 = vld [vmem:[%s595 + $0x7c] sm:$0xf]
        %v792 = vld [vmem:[%s701] sm:$0x1]
        %v794 = vlaneseq
        %v795 = vshrl.u32 %v794, 7
        %v796 = vsub.s32 0, %v795
        %v797 = vrot.slane %v792, %v796
        %v831 = vunpack.c.l.b16 %v760
        %v832 = vunpack.c.l.b16 %v761
        %v833 = vunpack.c.l.b16 %v762
        %v834 = vunpack.c.l.b16 %v763
        %v835 = vunpack.c.l.b16 %v764
        %v836 = vunpack.c.l.b16 %v765
        %v837 = vunpack.c.l.b16 %v766
        %v838 = vunpack.c.l.b16 %v767
        %v839 = vunpack.c.l.b16 %v768
        %v840 = vunpack.c.l.b16 %v769
        %v841 = vunpack.c.l.b16 %v770
        %v842 = vunpack.c.l.b16 %v771
        %v843 = vunpack.c.l.b16 %v772
        %v844 = vunpack.c.l.b16 %v773
        %v845 = vunpack.c.l.b16 %v774
        %v846 = vunpack.c.l.b16 %v775
        %v847 = vunpack.c.l.b16 %v776
        %v848 = vunpack.c.l.b16 %v777
        %v849 = vunpack.c.l.b16 %v778
        %v850 = vunpack.c.l.b16 %v779
        %v851 = vunpack.c.l.b16 %v780
        %v852 = vunpack.c.l.b16 %v781
        %v853 = vunpack.c.l.b16 %v782
        %v854 = vunpack.c.l.b16 %v783
        %v855 = vunpack.c.l.b16 %v784
        %v856 = vunpack.c.l.b16 %v785
        %v857 = vunpack.c.l.b16 %v786
        %v858 = vunpack.c.l.b16 %v787
        %v859 = vunpack.c.l.b16 %v788
        %v860 = vunpack.c.l.b16 %v789
        %v861 = vunpack.c.l.b16 %v790
        %v862 = vunpack.c.l.b16 %v791
        %v863 = vpack.c.b16 %v832, %v831
        %v864 = vpack.c.b16 %v834, %v833
        %v865 = vpack.c.b16 %v836, %v835
        %v866 = vpack.c.b16 %v838, %v837
        %v867 = vpack.c.b16 %v840, %v839
        %v868 = vpack.c.b16 %v842, %v841
        %v869 = vpack.c.b16 %v844, %v843
        %v870 = vpack.c.b16 %v846, %v845
        %v871 = vpack.c.b16 %v848, %v847
        %v872 = vpack.c.b16 %v850, %v849
        %v873 = vpack.c.b16 %v852, %v851
        %v874 = vpack.c.b16 %v854, %v853
        %v875 = vpack.c.b16 %v856, %v855
        %v876 = vpack.c.b16 %v858, %v857
        %v877 = vpack.c.b16 %v860, %v859
        %v878 = vpack.c.b16 %v862, %v861
        %895 = vmatprep.subr.bf16.mxu0 0
        %896 = vmatpush1.bf16.msra.mxu0 %v863
        %897 = vmatprep.subr.bf16.mxu0 0
        %898 = vmatpush1.bf16.msra.mxu0 %v864
        %899 = vmatprep.subr.bf16.mxu0 0
        %900 = vmatpush1.bf16.msra.mxu0 %v865
        %901 = vmatprep.subr.bf16.mxu0 0
        %902 = vmatpush1.bf16.msra.mxu0 %v866
        %903 = vmatprep.subr.bf16.mxu0 0
        %904 = vmatpush1.bf16.msra.mxu0 %v867
        %905 = vmatprep.subr.bf16.mxu0 0
        %906 = vmatpush1.bf16.msra.mxu0 %v868
        %907 = vmatprep.subr.bf16.mxu0 0
        %908 = vmatpush1.bf16.msra.mxu0 %v869
        %909 = vmatprep.subr.bf16.mxu0 0
        %910 = vmatpush1.bf16.msra.mxu0 %v870
        %911 = vmatprep.subr.bf16.mxu0 0
        %912 = vmatpush1.bf16.msra.mxu0 %v871
        %913 = vmatprep.subr.bf16.mxu0 0
        %914 = vmatpush1.bf16.msra.mxu0 %v872
        %915 = vmatprep.subr.bf16.mxu0 0
        %916 = vmatpush1.bf16.msra.mxu0 %v873
        %917 = vmatprep.subr.bf16.mxu0 0
        %918 = vmatpush1.bf16.msra.mxu0 %v874
        %919 = vmatprep.subr.bf16.mxu0 0
        %920 = vmatpush1.bf16.msra.mxu0 %v875
        %921 = vmatprep.subr.bf16.mxu0 0
        %922 = vmatpush1.bf16.msra.mxu0 %v876
        %923 = vmatprep.subr.bf16.mxu0 0
        %924 = vmatpush1.bf16.msra.mxu0 %v877
        %925 = vmatprep.subr.bf16.mxu0 0
        %926 = vmatpush1.bf16.msra.mxu0 %v878
        %927 = vmatprep.mubr.bf16.mxu0 %v745
        %928 = vmatmul.mubr.bf16.gmra.mrb[0].mxu0 %v744
        %v929 = vpop.f32.mrb[0].mxu0
        %v930 = vadd.f32 %v797, %v929
        %v931 = vpop.f32.mrb[0].mxu0
        %v932 = vpop.f32.mrb[0].mxu0
        %v933 = vadd.f32 %v797, %v932
        %v934 = vpop.f32.mrb[0].mxu0
        %935 = vmatprep.mubr.bf16.mxu0 %v747
        %936 = vmatmul.mubr.bf16.gmra.mrb[0].mxu0 %v746
        %v937 = vpop.f32.mrb[0].mxu0
        %v938 = vadd.f32 %v797, %v937
        %v939 = vpop.f32.mrb[0].mxu0
        %v940 = vpop.f32.mrb[0].mxu0
        %v941 = vadd.f32 %v797, %v940
        %v942 = vpop.f32.mrb[0].mxu0
        %943 = vmatprep.mubr.bf16.mxu0 %v749
        %944 = vmatmul.mubr.bf16.gmra.mrb[0].mxu0 %v748
        %v945 = vpop.f32.mrb[0].mxu0
        %v946 = vadd.f32 %v797, %v945
        %v947 = vpop.f32.mrb[0].mxu0
        %v948 = vpop.f32.mrb[0].mxu0
        %v949 = vadd.f32 %v797, %v948
        %v950 = vpop.f32.mrb[0].mxu0
        %951 = vmatprep.mubr.bf16.mxu0 %v751
        %952 = vmatmul.mubr.bf16.gmra.mrb[0].mxu0 %v750
        %v953 = vpop.f32.mrb[0].mxu0
        %v954 = vadd.f32 %v797, %v953
        %v955 = vpop.f32.mrb[0].mxu0
        %v956 = vpop.f32.mrb[0].mxu0
        %v957 = vadd.f32 %v797, %v956
        %v958 = vpop.f32.mrb[0].mxu0
        %959 = vmatprep.mubr.bf16.mxu0 %v753
        %960 = vmatmul.mubr.bf16.gmra.mrb[0].mxu0 %v752
        %v961 = vpop.f32.mrb[0].mxu0
        %v962 = vadd.f32 %v797, %v961
        %v963 = vpop.f32.mrb[0].mxu0
        %v964 = vpop.f32.mrb[0].mxu0
        %v965 = vadd.f32 %v797, %v964
        %v966 = vpop.f32.mrb[0].mxu0
        %967 = vmatprep.mubr.bf16.mxu0 %v755
        %968 = vmatmul.mubr.bf16.gmra.mrb[0].mxu0 %v754
        %v969 = vpop.f32.mrb[0].mxu0
        %v970 = vadd.f32 %v797, %v969
        %v971 = vpop.f32.mrb[0].mxu0
        %v972 = vpop.f32.mrb[0].mxu0
        %v973 = vadd.f32 %v797, %v972
        %v974 = vpop.f32.mrb[0].mxu0
        %975 = vmatprep.mubr.bf16.mxu0 %v757
        %976 = vmatmul.mubr.bf16.gmra.mrb[0].mxu0 %v756
        %v977 = vpop.f32.mrb[0].mxu0
        %v978 = vadd.f32 %v797, %v977
        %v979 = vpop.f32.mrb[0].mxu0
        %v980 = vpop.f32.mrb[0].mxu0
        %v981 = vadd.f32 %v797, %v980
        %v982 = vpop.f32.mrb[0].mxu0
        %983 = vmatprep.mubr.bf16.mxu0 %v759
        %984 = vmatmul.mubr.bf16.gmra.mrb[0].mxu0 %v758
        %v985 = vpop.f32.mrb[0].mxu0
        %v986 = vadd.f32 %v797, %v985
        %v987 = vpop.f32.mrb[0].mxu0
        %v988 = vpop.f32.mrb[0].mxu0
        %v989 = vadd.f32 %v797, %v988
        %v990 = vpop.f32.mrb[0].mxu0
        %991 = vdwg.mxu0
        %v992 = vpack.c.bf16 %v933, %v930
        %v993 = vpack.c.bf16 %v941, %v938
        %v994 = vpack.c.bf16 %v949, %v946
        %v995 = vpack.c.bf16 %v957, %v954
        %v996 = vpack.c.bf16 %v965, %v962
        %v997 = vpack.c.bf16 %v973, %v970
        %v998 = vpack.c.bf16 %v981, %v978
        %v999 = vpack.c.bf16 %v989, %v986
        %v1008 = vunpack.c.l.b16 %v992
        %v1009 = vunpack.c.h.b16 %v992
        %v1010 = vunpack.c.l.b16 %v993
        %v1011 = vunpack.c.h.b16 %v993
        %v1012 = vunpack.c.l.b16 %v994
        %v1013 = vunpack.c.h.b16 %v994
        %v1014 = vunpack.c.l.b16 %v995
        %v1015 = vunpack.c.h.b16 %v995
        %v1016 = vunpack.c.l.b16 %v996
        %v1017 = vunpack.c.h.b16 %v996
        %v1018 = vunpack.c.l.b16 %v997
        %v1019 = vunpack.c.h.b16 %v997
        %v1020 = vunpack.c.l.b16 %v998
        %v1021 = vunpack.c.h.b16 %v998
        %v1022 = vunpack.c.l.b16 %v999
        %v1023 = vunpack.c.h.b16 %v999
        %v1024 = vpack.c.b16 %v1008, %v1008
        %v1025 = vpack.c.b16 %v1009, %v1009
        %v1026 = vpack.c.b16 %v1010, %v1010
        %v1027 = vpack.c.b16 %v1011, %v1011
        %v1028 = vpack.c.b16 %v1012, %v1012
        %v1029 = vpack.c.b16 %v1013, %v1013
        %v1030 = vpack.c.b16 %v1014, %v1014
        %v1031 = vpack.c.b16 %v1015, %v1015
        %v1032 = vpack.c.b16 %v1016, %v1016
        %v1033 = vpack.c.b16 %v1017, %v1017
        %v1034 = vpack.c.b16 %v1018, %v1018
        %v1035 = vpack.c.b16 %v1019, %v1019
        %v1036 = vpack.c.b16 %v1020, %v1020
        %v1037 = vpack.c.b16 %v1021, %v1021
        %v1038 = vpack.c.b16 %v1022, %v1022
        %v1039 = vpack.c.b16 %v1023, %v1023
        %1056 = vst [vmem:[%s681] sm:$0xf] %v1024
        %1057 = vst [vmem:[%s681 + $0x4] sm:$0xf] %v1025
        %1058 = vst [vmem:[%s681 + $0x8] sm:$0xf] %v1026
        %1059 = vst [vmem:[%s681 + $0xc] sm:$0xf] %v1027
        %1060 = vst [vmem:[%s681 + $0x10] sm:$0xf] %v1028
        %1061 = vst [vmem:[%s681 + $0x14] sm:$0xf] %v1029
        %1062 = vst [vmem:[%s681 + $0x18] sm:$0xf] %v1030
        %1063 = vst [vmem:[%s681 + $0x1c] sm:$0xf] %v1031
        %1064 = vst [vmem:[%s681 + $0x20] sm:$0xf] %v1032
        %1065 = vst [vmem:[%s681 + $0x24] sm:$0xf] %v1033
        %1066 = vst [vmem:[%s681 + $0x28] sm:$0xf] %v1034
        %1067 = vst [vmem:[%s681 + $0x2c] sm:$0xf] %v1035
        %1068 = vst [vmem:[%s681 + $0x30] sm:$0xf] %v1036
        %1069 = vst [vmem:[%s681 + $0x34] sm:$0xf] %v1037
        %1070 = vst [vmem:[%s681 + $0x38] sm:$0xf] %v1038
        %1071 = vst [vmem:[%s681 + $0x3c] sm:$0xf] %v1039
        %v1072 = vld [vmem:[%s577] sm:$0xff]
        %v1073 = vld [vmem:[%s577 + $0x8] sm:$0xff]
        %v1074 = vld [vmem:[%s577 + $0x10] sm:$0xff]
        %v1075 = vld [vmem:[%s577 + $0x18] sm:$0xff]
        %v1076 = vld [vmem:[%s577 + $0x20] sm:$0xff]
        %v1077 = vld [vmem:[%s577 + $0x28] sm:$0xff]
        %v1078 = vld [vmem:[%s577 + $0x30] sm:$0xff]
        %v1079 = vld [vmem:[%s577 + $0x38] sm:$0xff]
        %v1080 = vld [vmem:[%s577 + $0x40] sm:$0xff]
        %v1081 = vld [vmem:[%s577 + $0x48] sm:$0xff]
        %v1082 = vld [vmem:[%s577 + $0x50] sm:$0xff]
        %v1083 = vld [vmem:[%s577 + $0x58] sm:$0xff]
        %v1084 = vld [vmem:[%s577 + $0x60] sm:$0xff]
        %v1085 = vld [vmem:[%s577 + $0x68] sm:$0xff]
        %v1086 = vld [vmem:[%s577 + $0x70] sm:$0xff]
        %v1087 = vld [vmem:[%s577 + $0x78] sm:$0xff]
        %v1088 = vld [vmem:[%s577 + $0x80] sm:$0xff]
        %v1089 = vld [vmem:[%s577 + $0x88] sm:$0xff]
        %v1090 = vld [vmem:[%s577 + $0x90] sm:$0xff]
        %v1091 = vld [vmem:[%s577 + $0x98] sm:$0xff]
        %v1092 = vld [vmem:[%s577 + $0xa0] sm:$0xff]
        %v1093 = vld [vmem:[%s577 + $0xa8] sm:$0xff]
        %v1094 = vld [vmem:[%s577 + $0xb0] sm:$0xff]
        %v1095 = vld [vmem:[%s577 + $0xb8] sm:$0xff]
        %v1096 = vld [vmem:[%s577 + $0xc0] sm:$0xff]
        %v1097 = vld [vmem:[%s577 + $0xc8] sm:$0xff]
        %v1098 = vld [vmem:[%s577 + $0xd0] sm:$0xff]
        %v1099 = vld [vmem:[%s577 + $0xd8] sm:$0xff]
        %v1100 = vld [vmem:[%s577 + $0xe0] sm:$0xff]
        %v1101 = vld [vmem:[%s577 + $0xe8] sm:$0xff]
        %v1102 = vld [vmem:[%s577 + $0xf0] sm:$0xff]
        %v1103 = vld [vmem:[%s577 + $0xf8] sm:$0xff]
        %v1104 = vpack.c.bf16 %v1074, %v1072
        %v1105 = vpack.c.bf16 %v1075, %v1073
        %v1106 = vpack.c.bf16 %v1078, %v1076
        %v1107 = vpack.c.bf16 %v1079, %v1077
        %v1108 = vpack.c.bf16 %v1082, %v1080
        %v1109 = vpack.c.bf16 %v1083, %v1081
        %v1110 = vpack.c.bf16 %v1086, %v1084
        %v1111 = vpack.c.bf16 %v1087, %v1085
        %v1112 = vpack.c.bf16 %v1090, %v1088
        %v1113 = vpack.c.bf16 %v1091, %v1089
        %v1114 = vpack.c.bf16 %v1094, %v1092
        %v1115 = vpack.c.bf16 %v1095, %v1093
        %v1116 = vpack.c.bf16 %v1098, %v1096
        %v1117 = vpack.c.bf16 %v1099, %v1097
        %v1118 = vpack.c.bf16 %v1102, %v1100
        %v1119 = vpack.c.bf16 %v1103, %v1101
        %v1120 = vld [vmem:[%s604] sm:$0xf]
        %v1121 = vld [vmem:[%s604 + $0x4] sm:$0xf]
        %v1122 = vld [vmem:[%s604 + $0x8] sm:$0xf]
        %v1123 = vld [vmem:[%s604 + $0xc] sm:$0xf]
        %v1124 = vld [vmem:[%s604 + $0x10] sm:$0xf]
        %v1125 = vld [vmem:[%s604 + $0x14] sm:$0xf]
        %v1126 = vld [vmem:[%s604 + $0x18] sm:$0xf]
        %v1127 = vld [vmem:[%s604 + $0x1c] sm:$0xf]
        %v1128 = vld [vmem:[%s604 + $0x20] sm:$0xf]
        %v1129 = vld [vmem:[%s604 + $0x24] sm:$0xf]
        %v1130 = vld [vmem:[%s604 + $0x28] sm:$0xf]
        %v1131 = vld [vmem:[%s604 + $0x2c] sm:$0xf]
        %v1132 = vld [vmem:[%s604 + $0x30] sm:$0xf]
        %v1133 = vld [vmem:[%s604 + $0x34] sm:$0xf]
        %v1134 = vld [vmem:[%s604 + $0x38] sm:$0xf]
        %v1135 = vld [vmem:[%s604 + $0x3c] sm:$0xf]
        %v1136 = vld [vmem:[%s604 + $0x40] sm:$0xf]
        %v1137 = vld [vmem:[%s604 + $0x44] sm:$0xf]
        %v1138 = vld [vmem:[%s604 + $0x48] sm:$0xf]
        %v1139 = vld [vmem:[%s604 + $0x4c] sm:$0xf]
        %v1140 = vld [vmem:[%s604 + $0x50] sm:$0xf]
        %v1141 = vld [vmem:[%s604 + $0x54] sm:$0xf]
        %v1142 = vld [vmem:[%s604 + $0x58] sm:$0xf]
        %v1143 = vld [vmem:[%s604 + $0x5c] sm:$0xf]
        %v1144 = vld [vmem:[%s604 + $0x60] sm:$0xf]
        %v1145 = vld [vmem:[%s604 + $0x64] sm:$0xf]
        %v1146 = vld [vmem:[%s604 + $0x68] sm:$0xf]
        %v1147 = vld [vmem:[%s604 + $0x6c] sm:$0xf]
        %v1148 = vld [vmem:[%s604 + $0x70] sm:$0xf]
        %v1149 = vld [vmem:[%s604 + $0x74] sm:$0xf]
        %v1150 = vld [vmem:[%s604 + $0x78] sm:$0xf]
        %v1151 = vld [vmem:[%s604 + $0x7c] sm:$0xf]
        %v1152 = vld [vmem:[%s704] sm:$0x1]
        %v1154 = vlaneseq
        %v1155 = vshrl.u32 %v1154, 7
        %v1156 = vsub.s32 0, %v1155
        %v1157 = vrot.slane %v1152, %v1156
        %v1191 = vunpack.c.l.b16 %v1120
        %v1192 = vunpack.c.l.b16 %v1121
        %v1193 = vunpack.c.l.b16 %v1122
        %v1194 = vunpack.c.l.b16 %v1123
        %v1195 = vunpack.c.l.b16 %v1124
        %v1196 = vunpack.c.l.b16 %v1125
        %v1197 = vunpack.c.l.b16 %v1126
        %v1198 = vunpack.c.l.b16 %v1127
        %v1199 = vunpack.c.l.b16 %v1128
        %v1200 = vunpack.c.l.b16 %v1129
        %v1201 = vunpack.c.l.b16 %v1130
        %v1202 = vunpack.c.l.b16 %v1131
        %v1203 = vunpack.c.l.b16 %v1132
        %v1204 = vunpack.c.l.b16 %v1133
        %v1205 = vunpack.c.l.b16 %v1134
        %v1206 = vunpack.c.l.b16 %v1135
        %v1207 = vunpack.c.l.b16 %v1136
        %v1208 = vunpack.c.l.b16 %v1137
        %v1209 = vunpack.c.l.b16 %v1138
        %v1210 = vunpack.c.l.b16 %v1139
        %v1211 = vunpack.c.l.b16 %v1140
        %v1212 = vunpack.c.l.b16 %v1141
        %v1213 = vunpack.c.l.b16 %v1142
        %v1214 = vunpack.c.l.b16 %v1143
        %v1215 = vunpack.c.l.b16 %v1144
        %v1216 = vunpack.c.l.b16 %v1145
        %v1217 = vunpack.c.l.b16 %v1146
        %v1218 = vunpack.c.l.b16 %v1147
        %v1219 = vunpack.c.l.b16 %v1148
        %v1220 = vunpack.c.l.b16 %v1149
        %v1221 = vunpack.c.l.b16 %v1150
        %v1222 = vunpack.c.l.b16 %v1151
        %v1223 = vpack.c.b16 %v1192, %v1191
        %v1224 = vpack.c.b16 %v1194, %v1193
        %v1225 = vpack.c.b16 %v1196, %v1195
        %v1226 = vpack.c.b16 %v1198, %v1197
        %v1227 = vpack.c.b16 %v1200, %v1199
        %v1228 = vpack.c.b16 %v1202, %v1201
        %v1229 = vpack.c.b16 %v1204, %v1203
        %v1230 = vpack.c.b16 %v1206, %v1205
        %v1231 = vpack.c.b16 %v1208, %v1207
        %v1232 = vpack.c.b16 %v1210, %v1209
        %v1233 = vpack.c.b16 %v1212, %v1211
        %v1234 = vpack.c.b16 %v1214, %v1213
        %v1235 = vpack.c.b16 %v1216, %v1215
        %v1236 = vpack.c.b16 %v1218, %v1217
        %v1237 = vpack.c.b16 %v1220, %v1219
        %v1238 = vpack.c.b16 %v1222, %v1221
        %1255 = vmatprep.subr.bf16.mxu0 0
        %1256 = vmatpush1.bf16.msra.mxu0 %v1223
        %1257 = vmatprep.subr.bf16.mxu0 0
        %1258 = vmatpush1.bf16.msra.mxu0 %v1224
        %1259 = vmatprep.subr.bf16.mxu0 0
        %1260 = vmatpush1.bf16.msra.mxu0 %v1225
        %1261 = vmatprep.subr.bf16.mxu0 0
        %1262 = vmatpush1.bf16.msra.mxu0 %v1226
        %1263 = vmatprep.subr.bf16.mxu0 0
        %1264 = vmatpush1.bf16.msra.mxu0 %v1227
        %1265 = vmatprep.subr.bf16.mxu0 0
        %1266 = vmatpush1.bf16.msra.mxu0 %v1228
        %1267 = vmatprep.subr.bf16.mxu0 0
        %1268 = vmatpush1.bf16.msra.mxu0 %v1229
        %1269 = vmatprep.subr.bf16.mxu0 0
        %1270 = vmatpush1.bf16.msra.mxu0 %v1230
        %1271 = vmatprep.subr.bf16.mxu0 0
        %1272 = vmatpush1.bf16.msra.mxu0 %v1231
        %1273 = vmatprep.subr.bf16.mxu0 0
        %1274 = vmatpush1.bf16.msra.mxu0 %v1232
        %1275 = vmatprep.subr.bf16.mxu0 0
        %1276 = vmatpush1.bf16.msra.mxu0 %v1233
        %1277 = vmatprep.subr.bf16.mxu0 0
        %1278 = vmatpush1.bf16.msra.mxu0 %v1234
        %1279 = vmatprep.subr.bf16.mxu0 0
        %1280 = vmatpush1.bf16.msra.mxu0 %v1235
        %1281 = vmatprep.subr.bf16.mxu0 0
        %1282 = vmatpush1.bf16.msra.mxu0 %v1236
        %1283 = vmatprep.subr.bf16.mxu0 0
        %1284 = vmatpush1.bf16.msra.mxu0 %v1237
        %1285 = vmatprep.subr.bf16.mxu0 0
        %1286 = vmatpush1.bf16.msra.mxu0 %v1238
        %1287 = vmatprep.mubr.bf16.mxu0 %v1105
        %1288 = vmatmul.mubr.bf16.gmra.mrb[0].mxu0 %v1104
        %v1289 = vpop.f32.mrb[0].mxu0
        %v1290 = vadd.f32 %v1157, %v1289
        %v1291 = vpop.f32.mrb[0].mxu0
        %v1292 = vpop.f32.mrb[0].mxu0
        %v1293 = vadd.f32 %v1157, %v1292
        %v1294 = vpop.f32.mrb[0].mxu0
        %1295 = vmatprep.mubr.bf16.mxu0 %v1107
        %1296 = vmatmul.mubr.bf16.gmra.mrb[0].mxu0 %v1106
        %v1297 = vpop.f32.mrb[0].mxu0
        %v1298 = vadd.f32 %v1157, %v1297
        %v1299 = vpop.f32.mrb[0].mxu0
        %v1300 = vpop.f32.mrb[0].mxu0
        %v1301 = vadd.f32 %v1157, %v1300
        %v1302 = vpop.f32.mrb[0].mxu0
        %1303 = vmatprep.mubr.bf16.mxu0 %v1109
        %1304 = vmatmul.mubr.bf16.gmra.mrb[0].mxu0 %v1108
        %v1305 = vpop.f32.mrb[0].mxu0
        %v1306 = vadd.f32 %v1157, %v1305
        %v1307 = vpop.f32.mrb[0].mxu0
        %v1308 = vpop.f32.mrb[0].mxu0
        %v1309 = vadd.f32 %v1157, %v1308
        %v1310 = vpop.f32.mrb[0].mxu0
        %1311 = vmatprep.mubr.bf16.mxu0 %v1111
        %1312 = vmatmul.mubr.bf16.gmra.mrb[0].mxu0 %v1110
        %v1313 = vpop.f32.mrb[0].mxu0
        %v1314 = vadd.f32 %v1157, %v1313
        %v1315 = vpop.f32.mrb[0].mxu0
        %v1316 = vpop.f32.mrb[0].mxu0
        %v1317 = vadd.f32 %v1157, %v1316
        %v1318 = vpop.f32.mrb[0].mxu0
        %1319 = vmatprep.mubr.bf16.mxu0 %v1113
        %1320 = vmatmul.mubr.bf16.gmra.mrb[0].mxu0 %v1112
        %v1321 = vpop.f32.mrb[0].mxu0
        %v1322 = vadd.f32 %v1157, %v1321
        %v1323 = vpop.f32.mrb[0].mxu0
        %v1324 = vpop.f32.mrb[0].mxu0
        %v1325 = vadd.f32 %v1157, %v1324
        %v1326 = vpop.f32.mrb[0].mxu0
        %1327 = vmatprep.mubr.bf16.mxu0 %v1115
        %1328 = vmatmul.mubr.bf16.gmra.mrb[0].mxu0 %v1114
        %v1329 = vpop.f32.mrb[0].mxu0
        %v1330 = vadd.f32 %v1157, %v1329
        %v1331 = vpop.f32.mrb[0].mxu0
        %v1332 = vpop.f32.mrb[0].mxu0
        %v1333 = vadd.f32 %v1157, %v1332
        %v1334 = vpop.f32.mrb[0].mxu0
        %1335 = vmatprep.mubr.bf16.mxu0 %v1117
        %1336 = vmatmul.mubr.bf16.gmra.mrb[0].mxu0 %v1116
        %v1337 = vpop.f32.mrb[0].mxu0
        %v1338 = vadd.f32 %v1157, %v1337
        %v1339 = vpop.f32.mrb[0].mxu0
        %v1340 = vpop.f32.mrb[0].mxu0
        %v1341 = vadd.f32 %v1157, %v1340
        %v1342 = vpop.f32.mrb[0].mxu0
        %1343 = vmatprep.mubr.bf16.mxu0 %v1119
        %1344 = vmatmul.mubr.bf16.gmra.mrb[0].mxu0 %v1118
        %v1345 = vpop.f32.mrb[0].mxu0
        %v1346 = vadd.f32 %v1157, %v1345
        %v1347 = vpop.f32.mrb[0].mxu0
        %v1348 = vpop.f32.mrb[0].mxu0
        %v1349 = vadd.f32 %v1157, %v1348
        %v1350 = vpop.f32.mrb[0].mxu0
        %1351 = vdwg.mxu0
        %v1352 = vpack.c.bf16 %v1293, %v1290
        %v1353 = vpack.c.bf16 %v1301, %v1298
        %v1354 = vpack.c.bf16 %v1309, %v1306
        %v1355 = vpack.c.bf16 %v1317, %v1314
        %v1356 = vpack.c.bf16 %v1325, %v1322
        %v1357 = vpack.c.bf16 %v1333, %v1330
        %v1358 = vpack.c.bf16 %v1341, %v1338
        %v1359 = vpack.c.bf16 %v1349, %v1346
        %v1368 = vunpack.c.l.b16 %v1352
        %v1369 = vunpack.c.h.b16 %v1352
        %v1370 = vunpack.c.l.b16 %v1353
        %v1371 = vunpack.c.h.b16 %v1353
        %v1372 = vunpack.c.l.b16 %v1354
        %v1373 = vunpack.c.h.b16 %v1354
        %v1374 = vunpack.c.l.b16 %v1355
        %v1375 = vunpack.c.h.b16 %v1355
        %v1376 = vunpack.c.l.b16 %v1356
        %v1377 = vunpack.c.h.b16 %v1356
        %v1378 = vunpack.c.l.b16 %v1357
        %v1379 = vunpack.c.h.b16 %v1357
        %v1380 = vunpack.c.l.b16 %v1358
        %v1381 = vunpack.c.h.b16 %v1358
        %v1382 = vunpack.c.l.b16 %v1359
        %v1383 = vunpack.c.h.b16 %v1359
        %v1384 = vpack.c.b16 %v1368, %v1368
        %v1385 = vpack.c.b16 %v1369, %v1369
        %v1386 = vpack.c.b16 %v1370, %v1370
        %v1387 = vpack.c.b16 %v1371, %v1371
        %v1388 = vpack.c.b16 %v1372, %v1372
        %v1389 = vpack.c.b16 %v1373, %v1373
        %v1390 = vpack.c.b16 %v1374, %v1374
        %v1391 = vpack.c.b16 %v1375, %v1375
        %v1392 = vpack.c.b16 %v1376, %v1376
        %v1393 = vpack.c.b16 %v1377, %v1377
        %v1394 = vpack.c.b16 %v1378, %v1378
        %v1395 = vpack.c.b16 %v1379, %v1379
        %v1396 = vpack.c.b16 %v1380, %v1380
        %v1397 = vpack.c.b16 %v1381, %v1381
        %v1398 = vpack.c.b16 %v1382, %v1382
        %v1399 = vpack.c.b16 %v1383, %v1383
        %1416 = vst [vmem:[%s688] sm:$0xf] %v1384
        %1417 = vst [vmem:[%s688 + $0x4] sm:$0xf] %v1385
        %1418 = vst [vmem:[%s688 + $0x8] sm:$0xf] %v1386
        %1419 = vst [vmem:[%s688 + $0xc] sm:$0xf] %v1387
        %1420 = vst [vmem:[%s688 + $0x10] sm:$0xf] %v1388
        %1421 = vst [vmem:[%s688 + $0x14] sm:$0xf] %v1389
        %1422 = vst [vmem:[%s688 + $0x18] sm:$0xf] %v1390
        %1423 = vst [vmem:[%s688 + $0x1c] sm:$0xf] %v1391
        %1424 = vst [vmem:[%s688 + $0x20] sm:$0xf] %v1392
        %1425 = vst [vmem:[%s688 + $0x24] sm:$0xf] %v1393
        %1426 = vst [vmem:[%s688 + $0x28] sm:$0xf] %v1394
        %1427 = vst [vmem:[%s688 + $0x2c] sm:$0xf] %v1395
        %1428 = vst [vmem:[%s688 + $0x30] sm:$0xf] %v1396
        %1429 = vst [vmem:[%s688 + $0x34] sm:$0xf] %v1397
        %1430 = vst [vmem:[%s688 + $0x38] sm:$0xf] %v1398
        %1431 = vst [vmem:[%s688 + $0x3c] sm:$0xf] %v1399
        %v1432 = vld [vmem:[%s586] sm:$0xff]
        %v1433 = vld [vmem:[%s586 + $0x8] sm:$0xff]
        %v1434 = vld [vmem:[%s586 + $0x10] sm:$0xff]
        %v1435 = vld [vmem:[%s586 + $0x18] sm:$0xff]
        %v1436 = vld [vmem:[%s586 + $0x20] sm:$0xff]
        %v1437 = vld [vmem:[%s586 + $0x28] sm:$0xff]
        %v1438 = vld [vmem:[%s586 + $0x30] sm:$0xff]
        %v1439 = vld [vmem:[%s586 + $0x38] sm:$0xff]
        %v1440 = vld [vmem:[%s586 + $0x40] sm:$0xff]
        %v1441 = vld [vmem:[%s586 + $0x48] sm:$0xff]
        %v1442 = vld [vmem:[%s586 + $0x50] sm:$0xff]
        %v1443 = vld [vmem:[%s586 + $0x58] sm:$0xff]
        %v1444 = vld [vmem:[%s586 + $0x60] sm:$0xff]
        %v1445 = vld [vmem:[%s586 + $0x68] sm:$0xff]
        %v1446 = vld [vmem:[%s586 + $0x70] sm:$0xff]
        %v1447 = vld [vmem:[%s586 + $0x78] sm:$0xff]
        %v1448 = vld [vmem:[%s586 + $0x80] sm:$0xff]
        %v1449 = vld [vmem:[%s586 + $0x88] sm:$0xff]
        %v1450 = vld [vmem:[%s586 + $0x90] sm:$0xff]
        %v1451 = vld [vmem:[%s586 + $0x98] sm:$0xff]
        %v1452 = vld [vmem:[%s586 + $0xa0] sm:$0xff]
        %v1453 = vld [vmem:[%s586 + $0xa8] sm:$0xff]
        %v1454 = vld [vmem:[%s586 + $0xb0] sm:$0xff]
        %v1455 = vld [vmem:[%s586 + $0xb8] sm:$0xff]
        %v1456 = vld [vmem:[%s586 + $0xc0] sm:$0xff]
        %v1457 = vld [vmem:[%s586 + $0xc8] sm:$0xff]
        %v1458 = vld [vmem:[%s586 + $0xd0] sm:$0xff]
        %v1459 = vld [vmem:[%s586 + $0xd8] sm:$0xff]
        %v1460 = vld [vmem:[%s586 + $0xe0] sm:$0xff]
        %v1461 = vld [vmem:[%s586 + $0xe8] sm:$0xff]
        %v1462 = vld [vmem:[%s586 + $0xf0] sm:$0xff]
        %v1463 = vld [vmem:[%s586 + $0xf8] sm:$0xff]
        %v1464 = vpack.c.bf16 %v1434, %v1432
        %v1465 = vpack.c.bf16 %v1435, %v1433
        %v1466 = vpack.c.bf16 %v1438, %v1436
        %v1467 = vpack.c.bf16 %v1439, %v1437
        %v1468 = vpack.c.bf16 %v1442, %v1440
        %v1469 = vpack.c.bf16 %v1443, %v1441
        %v1470 = vpack.c.bf16 %v1446, %v1444
        %v1471 = vpack.c.bf16 %v1447, %v1445
        %v1472 = vpack.c.bf16 %v1450, %v1448
        %v1473 = vpack.c.bf16 %v1451, %v1449
        %v1474 = vpack.c.bf16 %v1454, %v1452
        %v1475 = vpack.c.bf16 %v1455, %v1453
        %v1476 = vpack.c.bf16 %v1458, %v1456
        %v1477 = vpack.c.bf16 %v1459, %v1457
        %v1478 = vpack.c.bf16 %v1462, %v1460
        %v1479 = vpack.c.bf16 %v1463, %v1461
        %v1480 = vld [vmem:[%s613] sm:$0xf]
        %v1481 = vld [vmem:[%s613 + $0x4] sm:$0xf]
        %v1482 = vld [vmem:[%s613 + $0x8] sm:$0xf]
        %v1483 = vld [vmem:[%s613 + $0xc] sm:$0xf]
        %v1484 = vld [vmem:[%s613 + $0x10] sm:$0xf]
        %v1485 = vld [vmem:[%s613 + $0x14] sm:$0xf]
        %v1486 = vld [vmem:[%s613 + $0x18] sm:$0xf]
        %v1487 = vld [vmem:[%s613 + $0x1c] sm:$0xf]
        %v1488 = vld [vmem:[%s613 + $0x20] sm:$0xf]
        %v1489 = vld [vmem:[%s613 + $0x24] sm:$0xf]
        %v1490 = vld [vmem:[%s613 + $0x28] sm:$0xf]
        %v1491 = vld [vmem:[%s613 + $0x2c] sm:$0xf]
        %v1492 = vld [vmem:[%s613 + $0x30] sm:$0xf]
        %v1493 = vld [vmem:[%s613 + $0x34] sm:$0xf]
        %v1494 = vld [vmem:[%s613 + $0x38] sm:$0xf]
        %v1495 = vld [vmem:[%s613 + $0x3c] sm:$0xf]
        %v1496 = vld [vmem:[%s613 + $0x40] sm:$0xf]
        %v1497 = vld [vmem:[%s613 + $0x44] sm:$0xf]
        %v1498 = vld [vmem:[%s613 + $0x48] sm:$0xf]
        %v1499 = vld [vmem:[%s613 + $0x4c] sm:$0xf]
        %v1500 = vld [vmem:[%s613 + $0x50] sm:$0xf]
        %v1501 = vld [vmem:[%s613 + $0x54] sm:$0xf]
        %v1502 = vld [vmem:[%s613 + $0x58] sm:$0xf]
        %v1503 = vld [vmem:[%s613 + $0x5c] sm:$0xf]
        %v1504 = vld [vmem:[%s613 + $0x60] sm:$0xf]
        %v1505 = vld [vmem:[%s613 + $0x64] sm:$0xf]
        %v1506 = vld [vmem:[%s613 + $0x68] sm:$0xf]
        %v1507 = vld [vmem:[%s613 + $0x6c] sm:$0xf]
        %v1508 = vld [vmem:[%s613 + $0x70] sm:$0xf]
        %v1509 = vld [vmem:[%s613 + $0x74] sm:$0xf]
        %v1510 = vld [vmem:[%s613 + $0x78] sm:$0xf]
        %v1511 = vld [vmem:[%s613 + $0x7c] sm:$0xf]
        %v1512 = vld [vmem:[%s707] sm:$0x1]
        %v1514 = vlaneseq
        %v1515 = vshrl.u32 %v1514, 7
        %v1516 = vsub.s32 0, %v1515
        %v1517 = vrot.slane %v1512, %v1516
        %v1551 = vunpack.c.l.b16 %v1480
        %v1552 = vunpack.c.l.b16 %v1481
        %v1553 = vunpack.c.l.b16 %v1482
        %v1554 = vunpack.c.l.b16 %v1483
        %v1555 = vunpack.c.l.b16 %v1484
        %v1556 = vunpack.c.l.b16 %v1485
        %v1557 = vunpack.c.l.b16 %v1486
        %v1558 = vunpack.c.l.b16 %v1487
        %v1559 = vunpack.c.l.b16 %v1488
        %v1560 = vunpack.c.l.b16 %v1489
        %v1561 = vunpack.c.l.b16 %v1490
        %v1562 = vunpack.c.l.b16 %v1491
        %v1563 = vunpack.c.l.b16 %v1492
        %v1564 = vunpack.c.l.b16 %v1493
        %v1565 = vunpack.c.l.b16 %v1494
        %v1566 = vunpack.c.l.b16 %v1495
        %v1567 = vunpack.c.l.b16 %v1496
        %v1568 = vunpack.c.l.b16 %v1497
        %v1569 = vunpack.c.l.b16 %v1498
        %v1570 = vunpack.c.l.b16 %v1499
        %v1571 = vunpack.c.l.b16 %v1500
        %v1572 = vunpack.c.l.b16 %v1501
        %v1573 = vunpack.c.l.b16 %v1502
        %v1574 = vunpack.c.l.b16 %v1503
        %v1575 = vunpack.c.l.b16 %v1504
        %v1576 = vunpack.c.l.b16 %v1505
        %v1577 = vunpack.c.l.b16 %v1506
        %v1578 = vunpack.c.l.b16 %v1507
        %v1579 = vunpack.c.l.b16 %v1508
        %v1580 = vunpack.c.l.b16 %v1509
        %v1581 = vunpack.c.l.b16 %v1510
        %v1582 = vunpack.c.l.b16 %v1511
        %v1583 = vpack.c.b16 %v1552, %v1551
        %v1584 = vpack.c.b16 %v1554, %v1553
        %v1585 = vpack.c.b16 %v1556, %v1555
        %v1586 = vpack.c.b16 %v1558, %v1557
        %v1587 = vpack.c.b16 %v1560, %v1559
        %v1588 = vpack.c.b16 %v1562, %v1561
        %v1589 = vpack.c.b16 %v1564, %v1563
        %v1590 = vpack.c.b16 %v1566, %v1565
        %v1591 = vpack.c.b16 %v1568, %v1567
        %v1592 = vpack.c.b16 %v1570, %v1569
        %v1593 = vpack.c.b16 %v1572, %v1571
        %v1594 = vpack.c.b16 %v1574, %v1573
        %v1595 = vpack.c.b16 %v1576, %v1575
        %v1596 = vpack.c.b16 %v1578, %v1577
        %v1597 = vpack.c.b16 %v1580, %v1579
        %v1598 = vpack.c.b16 %v1582, %v1581
        %1615 = vmatprep.subr.bf16.mxu0 0
        %1616 = vmatpush1.bf16.msra.mxu0 %v1583
        %1617 = vmatprep.subr.bf16.mxu0 0
        %1618 = vmatpush1.bf16.msra.mxu0 %v1584
        %1619 = vmatprep.subr.bf16.mxu0 0
        %1620 = vmatpush1.bf16.msra.mxu0 %v1585
        %1621 = vmatprep.subr.bf16.mxu0 0
        %1622 = vmatpush1.bf16.msra.mxu0 %v1586
        %1623 = vmatprep.subr.bf16.mxu0 0
        %1624 = vmatpush1.bf16.msra.mxu0 %v1587
        %1625 = vmatprep.subr.bf16.mxu0 0
        %1626 = vmatpush1.bf16.msra.mxu0 %v1588
        %1627 = vmatprep.subr.bf16.mxu0 0
        %1628 = vmatpush1.bf16.msra.mxu0 %v1589
        %1629 = vmatprep.subr.bf16.mxu0 0
        %1630 = vmatpush1.bf16.msra.mxu0 %v1590
        %1631 = vmatprep.subr.bf16.mxu0 0
        %1632 = vmatpush1.bf16.msra.mxu0 %v1591
        %1633 = vmatprep.subr.bf16.mxu0 0
        %1634 = vmatpush1.bf16.msra.mxu0 %v1592
        %1635 = vmatprep.subr.bf16.mxu0 0
        %1636 = vmatpush1.bf16.msra.mxu0 %v1593
        %1637 = vmatprep.subr.bf16.mxu0 0
        %1638 = vmatpush1.bf16.msra.mxu0 %v1594
        %1639 = vmatprep.subr.bf16.mxu0 0
        %1640 = vmatpush1.bf16.msra.mxu0 %v1595
        %1641 = vmatprep.subr.bf16.mxu0 0
        %1642 = vmatpush1.bf16.msra.mxu0 %v1596
        %1643 = vmatprep.subr.bf16.mxu0 0
        %1644 = vmatpush1.bf16.msra.mxu0 %v1597
        %1645 = vmatprep.subr.bf16.mxu0 0
        %1646 = vmatpush1.bf16.msra.mxu0 %v1598
        %1647 = vmatprep.mubr.bf16.mxu0 %v1465
        %1648 = vmatmul.mubr.bf16.gmra.mrb[0].mxu0 %v1464
        %v1649 = vpop.f32.mrb[0].mxu0
        %v1650 = vadd.f32 %v1517, %v1649
        %v1651 = vpop.f32.mrb[0].mxu0
        %v1652 = vpop.f32.mrb[0].mxu0
        %v1653 = vadd.f32 %v1517, %v1652
        %v1654 = vpop.f32.mrb[0].mxu0
        %1655 = vmatprep.mubr.bf16.mxu0 %v1467
        %1656 = vmatmul.mubr.bf16.gmra.mrb[0].mxu0 %v1466
        %v1657 = vpop.f32.mrb[0].mxu0
        %v1658 = vadd.f32 %v1517, %v1657
        %v1659 = vpop.f32.mrb[0].mxu0
        %v1660 = vpop.f32.mrb[0].mxu0
        %v1661 = vadd.f32 %v1517, %v1660
        %v1662 = vpop.f32.mrb[0].mxu0
        %1663 = vmatprep.mubr.bf16.mxu0 %v1469
        %1664 = vmatmul.mubr.bf16.gmra.mrb[0].mxu0 %v1468
        %v1665 = vpop.f32.mrb[0].mxu0
        %v1666 = vadd.f32 %v1517, %v1665
        %v1667 = vpop.f32.mrb[0].mxu0
        %v1668 = vpop.f32.mrb[0].mxu0
        %v1669 = vadd.f32 %v1517, %v1668
        %v1670 = vpop.f32.mrb[0].mxu0
        %1671 = vmatprep.mubr.bf16.mxu0 %v1471
        %1672 = vmatmul.mubr.bf16.gmra.mrb[0].mxu0 %v1470
        %v1673 = vpop.f32.mrb[0].mxu0
        %v1674 = vadd.f32 %v1517, %v1673
        %v1675 = vpop.f32.mrb[0].mxu0
        %v1676 = vpop.f32.mrb[0].mxu0
        %v1677 = vadd.f32 %v1517, %v1676
        %v1678 = vpop.f32.mrb[0].mxu0
        %1679 = vmatprep.mubr.bf16.mxu0 %v1473
        %1680 = vmatmul.mubr.bf16.gmra.mrb[0].mxu0 %v1472
        %v1681 = vpop.f32.mrb[0].mxu0
        %v1682 = vadd.f32 %v1517, %v1681
        %v1683 = vpop.f32.mrb[0].mxu0
        %v1684 = vpop.f32.mrb[0].mxu0
        %v1685 = vadd.f32 %v1517, %v1684
        %v1686 = vpop.f32.mrb[0].mxu0
        %1687 = vmatprep.mubr.bf16.mxu0 %v1475
        %1688 = vmatmul.mubr.bf16.gmra.mrb[0].mxu0 %v1474
        %v1689 = vpop.f32.mrb[0].mxu0
        %v1690 = vadd.f32 %v1517, %v1689
        %v1691 = vpop.f32.mrb[0].mxu0
        %v1692 = vpop.f32.mrb[0].mxu0
        %v1693 = vadd.f32 %v1517, %v1692
        %v1694 = vpop.f32.mrb[0].mxu0
        %1695 = vmatprep.mubr.bf16.mxu0 %v1477
        %1696 = vmatmul.mubr.bf16.gmra.mrb[0].mxu0 %v1476
        %v1697 = vpop.f32.mrb[0].mxu0
        %v1698 = vadd.f32 %v1517, %v1697
        %v1699 = vpop.f32.mrb[0].mxu0
        %v1700 = vpop.f32.mrb[0].mxu0
        %v1701 = vadd.f32 %v1517, %v1700
        %v1702 = vpop.f32.mrb[0].mxu0
        %1703 = vmatprep.mubr.bf16.mxu0 %v1479
        %1704 = vmatmul.mubr.bf16.gmra.mrb[0].mxu0 %v1478
        %v1705 = vpop.f32.mrb[0].mxu0
        %v1706 = vadd.f32 %v1517, %v1705
        %v1707 = vpop.f32.mrb[0].mxu0
        %v1708 = vpop.f32.mrb[0].mxu0
        %v1709 = vadd.f32 %v1517, %v1708
        %v1710 = vpop.f32.mrb[0].mxu0
        %1711 = vdwg.mxu0
        %v1712 = vpack.c.bf16 %v1653, %v1650
        %v1713 = vpack.c.bf16 %v1661, %v1658
        %v1714 = vpack.c.bf16 %v1669, %v1666
        %v1715 = vpack.c.bf16 %v1677, %v1674
        %v1716 = vpack.c.bf16 %v1685, %v1682
        %v1717 = vpack.c.bf16 %v1693, %v1690
        %v1718 = vpack.c.bf16 %v1701, %v1698
        %v1719 = vpack.c.bf16 %v1709, %v1706
        %v1728 = vunpack.c.l.b16 %v1712
        %v1729 = vunpack.c.h.b16 %v1712
        %v1730 = vunpack.c.l.b16 %v1713
        %v1731 = vunpack.c.h.b16 %v1713
        %v1732 = vunpack.c.l.b16 %v1714
        %v1733 = vunpack.c.h.b16 %v1714
        %v1734 = vunpack.c.l.b16 %v1715
        %v1735 = vunpack.c.h.b16 %v1715
        %v1736 = vunpack.c.l.b16 %v1716
        %v1737 = vunpack.c.h.b16 %v1716
        %v1738 = vunpack.c.l.b16 %v1717
        %v1739 = vunpack.c.h.b16 %v1717
        %v1740 = vunpack.c.l.b16 %v1718
        %v1741 = vunpack.c.h.b16 %v1718
        %v1742 = vunpack.c.l.b16 %v1719
        %v1743 = vunpack.c.h.b16 %v1719
        %v1744 = vpack.c.b16 %v1728, %v1728
        %v1745 = vpack.c.b16 %v1729, %v1729
        %v1746 = vpack.c.b16 %v1730, %v1730
        %v1747 = vpack.c.b16 %v1731, %v1731
        %v1748 = vpack.c.b16 %v1732, %v1732
        %v1749 = vpack.c.b16 %v1733, %v1733
        %v1750 = vpack.c.b16 %v1734, %v1734
        %v1751 = vpack.c.b16 %v1735, %v1735
        %v1752 = vpack.c.b16 %v1736, %v1736
        %v1753 = vpack.c.b16 %v1737, %v1737
        %v1754 = vpack.c.b16 %v1738, %v1738
        %v1755 = vpack.c.b16 %v1739, %v1739
        %v1756 = vpack.c.b16 %v1740, %v1740
        %v1757 = vpack.c.b16 %v1741, %v1741
        %v1758 = vpack.c.b16 %v1742, %v1742
        %v1759 = vpack.c.b16 %v1743, %v1743
        %1776 = vst [vmem:[%s695] sm:$0xf] %v1744
        %1777 = vst [vmem:[%s695 + $0x4] sm:$0xf] %v1745
        %1778 = vst [vmem:[%s695 + $0x8] sm:$0xf] %v1746
        %1779 = vst [vmem:[%s695 + $0xc] sm:$0xf] %v1747
        %1780 = vst [vmem:[%s695 + $0x10] sm:$0xf] %v1748
        %1781 = vst [vmem:[%s695 + $0x14] sm:$0xf] %v1749
        %1782 = vst [vmem:[%s695 + $0x18] sm:$0xf] %v1750
        %1783 = vst [vmem:[%s695 + $0x1c] sm:$0xf] %v1751
        %1784 = vst [vmem:[%s695 + $0x20] sm:$0xf] %v1752
        %1785 = vst [vmem:[%s695 + $0x24] sm:$0xf] %v1753
        %1786 = vst [vmem:[%s695 + $0x28] sm:$0xf] %v1754
        %1787 = vst [vmem:[%s695 + $0x2c] sm:$0xf] %v1755
        %1788 = vst [vmem:[%s695 + $0x30] sm:$0xf] %v1756
        %1789 = vst [vmem:[%s695 + $0x34] sm:$0xf] %v1757
        %1790 = vst [vmem:[%s695 + $0x38] sm:$0xf] %v1758
        %1791 = vst [vmem:[%s695 + $0x3c] sm:$0xf] %v1759
        %s1792 = sand.u32 %s312, 1
        %s1793 = scalar_lea.sflag [#allocation4], %s1792
        %s1794 = sand.u32 %s312, 1
        %s1795 = smul.addr %s1794, 64
        %s1796 = scalar_lea.vmem [#allocation13], %s1795
        %s1797 = sand.u32 %s41, 1
        %s1798 = scalar_lea.sflag [#allocation15], %s1797
        %s1799 = sand.u32 %s342, 1
        %s1800 = smul.addr %s1799, 64
        %s1801 = scalar_lea.vmem [#allocation14], %s1800
        %s1802 = sand.u32 %s41, 1
        %s1803 = scalar_lea.sflag [#allocation15], %s1802
        %s1804 = sand.u32 %s372, 1
        %s1805 = smul.addr %s1804, 64
        %s1806 = scalar_lea.vmem [#allocation16], %s1805
        // Predicated region
        $region81: #{tpu_custom_call.1} parent=55 // pred_check
          %p1807 = pneg %p322
        $region82: #{tpu_custom_call.1} parent=55 // pred_check_branch
          %1809 = sbr.rel (%p1807) target = $region84
        $region83: #{tpu_custom_call.1} parent=55 // pred_region
          %s1810 = smul.u32 16, %s47
          %s1812 = ssub.s32 1024, 1024
          %1813 = vsyncadd %s1793, %s1812
          %s1814 = smul.addr %s48, 32
          %s1815 = sadd.s32 %s1810, %s1814
          %s1816 = smul.addr %s46, 64
          %s1817 = sadd.s32 %s1815, %s1816
          %s1818 = smul.addr %s1817, 64
          %s1819 = scalar_lea.hbm %s9, %s1818
          %s1820 = sshll.u32 %s1796, 4
          %s1821 = int_to_ptr.vmem [resolvable:$true] %s1820
          %1826 = dma.vmem_to_hbm [thread:$0]  %s1821, 1024, %s1819, %s1793, 64, 64, 4
        $region84: #{tpu_custom_call.1} parent=55 // pred_fallthru
          _
        // Predicated region
        $region85: #{tpu_custom_call.1} parent=55 // pred_check
          %p1827 = pneg %p352
        $region86: #{tpu_custom_call.1} parent=55 // pred_check_branch
          %1829 = sbr.rel (%p1827) target = $region88
        $region87: #{tpu_custom_call.1} parent=55 // pred_region
          %s1830 = smul.u32 16, %s47
          %s1832 = ssub.s32 1024, 1024
          %1833 = vsyncadd %s1798, %s1832
          %s1834 = smul.addr %s48, 32
          %s1835 = sadd.s32 %s1830, %s1834
          %s1836 = smul.addr %s46, 64
          %s1837 = sadd.s32 %s1835, %s1836
          %s1838 = smul.addr %s1837, 64
          %s1839 = scalar_lea.hbm %s10, %s1838
          %s1840 = sshll.u32 %s1801, 4
          %s1841 = int_to_ptr.vmem [resolvable:$true] %s1840
          %1846 = dma.vmem_to_hbm [thread:$0]  %s1841, 1024, %s1839, %s1798, 64, 64, 4
        $region88: #{tpu_custom_call.1} parent=55 // pred_fallthru
          _
        // Predicated region
        $region89: #{tpu_custom_call.1} parent=55 // pred_check
          %p1847 = pneg %p382
        $region90: #{tpu_custom_call.1} parent=55 // pred_check_branch
          %1849 = sbr.rel (%p1847) target = $region92
        $region91: #{tpu_custom_call.1} parent=55 // pred_region
          %s1850 = smul.u32 16, %s47
          %s1852 = ssub.s32 1024, 1024
          %1853 = vsyncadd %s1803, %s1852
          %s1854 = smul.addr %s48, 32
          %s1855 = sadd.s32 %s1850, %s1854
          %s1856 = smul.addr %s46, 64
          %s1857 = sadd.s32 %s1855, %s1856
          %s1858 = smul.addr %s1857, 64
          %s1859 = scalar_lea.hbm %s11, %s1858
          %s1860 = sshll.u32 %s1806, 4
          %s1861 = int_to_ptr.vmem [resolvable:$true] %s1860
          %1866 = dma.vmem_to_hbm [thread:$0]  %s1861, 1024, %s1859, %s1803, 64, 64, 4
        $region92: #{tpu_custom_call.1} parent=55 // pred_fallthru
          _
      $region56: #{tpu_custom_call.1} parent=5 // pred_fallthru
        _
      %p1867 = scmp.le.s32.totalorder 2, %s36
      // Predicated region
      $region93: #{tpu_custom_call.1} parent=5 // pred_check
        %p1868 = pneg %p1867
      $region94: #{tpu_custom_call.1} parent=5 // pred_check_branch
        %1870 = sbr.rel (%p1868) target = $region96
      $region95: #{tpu_custom_call.1} parent=5 // pred_region
        %s1871 = ssub.s32 %s36, 2
        // Predicated region
        $region97: #{tpu_custom_call.1} parent=95 // pred_check
          %p1872 = pneg %p328
        $region98: #{tpu_custom_call.1} parent=95 // pred_check_branch
          %1874 = sbr.rel (%p1872) target = $region100
        $region99: #{tpu_custom_call.1} parent=95 // pred_region
          %s1875 = sand.u32 %s313, 1
          %s1876 = scalar_lea.sflag [#allocation4], %s1875
          %s1877 = sand.u32 %s313, 1
          %s1878 = smul.addr %s1877, 64
          %s1879 = scalar_lea.vmem [#allocation13], %s1878
          %1880 = dma.done %s1876, 1024
        $region100: #{tpu_custom_call.1} parent=95 // pred_fallthru
          _
        // Predicated region
        $region101: #{tpu_custom_call.1} parent=95 // pred_check
          %p1881 = pneg %p358
        $region102: #{tpu_custom_call.1} parent=95 // pred_check_branch
          %1883 = sbr.rel (%p1881) target = $region104
        $region103: #{tpu_custom_call.1} parent=95 // pred_region
          %s1884 = sand.u32 %s42, 1
          %s1885 = scalar_lea.sflag [#allocation15], %s1884
          %s1886 = sand.u32 %s343, 1
          %s1887 = smul.addr %s1886, 64
          %s1888 = scalar_lea.vmem [#allocation14], %s1887
          %1889 = dma.done %s1885, 1024
        $region104: #{tpu_custom_call.1} parent=95 // pred_fallthru
          _
        // Predicated region
        $region105: #{tpu_custom_call.1} parent=95 // pred_check
          %p1890 = pneg %p388
        $region106: #{tpu_custom_call.1} parent=95 // pred_check_branch
          %1892 = sbr.rel (%p1890) target = $region108
        $region107: #{tpu_custom_call.1} parent=95 // pred_region
          %s1893 = sand.u32 %s42, 1
          %s1894 = scalar_lea.sflag [#allocation15], %s1893
          %s1895 = sand.u32 %s373, 1
          %s1896 = smul.addr %s1895, 64
          %s1897 = scalar_lea.vmem [#allocation16], %s1896
          %1898 = dma.done %s1894, 1024
        $region108: #{tpu_custom_call.1} parent=95 // pred_fallthru
          _
      $region96: #{tpu_custom_call.1} parent=5 // pred_fallthru
        _
    $region6: #{tpu_custom_call.1} parent=1 // loop_footer
      %s40 = sadd.s32 1, %s36
    $region7: #{tpu_custom_call.1} parent=1 // loop_footer_branch
      %35 = sbr.rel target = $region3
    $region8: #{tpu_custom_call.1} parent=1 // loop_exit
      _
    %1899 = vsyncpa [#allocation3], 1
    %s1900 = scalar_lea.sflag [#allocation3], 1
    %1901 = vsyncpa %s1900, 1
    %1902 = vsyncpa [#allocation6], 1
    %s1903 = scalar_lea.sflag [#allocation6], 1
    %1904 = vsyncpa %s1903, 1
    %1905 = vsyncpa [#allocation9], 1
    %s1906 = scalar_lea.sflag [#allocation9], 1
    %1907 = vsyncpa %s1906, 1
    %1908 = vsyncpa [#allocation12], 1
    %s1909 = scalar_lea.sflag [#allocation12], 1
    %1910 = vsyncpa %s1909, 1
    %1911 = vsyncpa [#allocation4], 1
    %s1912 = scalar_lea.sflag [#allocation4], 1
    %1913 = vsyncpa %s1912, 1
    %1914 = vsyncpa [#allocation15], 1
    %s1915 = scalar_lea.sflag [#allocation15], 1
    %1916 = vsyncpa %s1915, 1

</llo_original>
